<compile_context>
chip_gen: v6e
topology: v6e:2x2x1
jax: 0.10.0
libtpu: 0.0.40
codegen_flags: <defaults>
</compile_context>

<pallas_src>
import functools

import jax
import jax.numpy as jnp
from jax.experimental import pallas as pl
from jax.experimental.pallas import tpu as pltpu


def _dense_block_kernel(*refs, N, H, W, C0, G, GP, L, eps, NS_pad):
    """Fused DenseBlock forward.

    refs layout:
      refs[0]            x_ref     (C0, NSP)      padded+flattened input (zero ring,
                                                   zero lane-pad columns)
      refs[1]            mask_ref  (1,  NSP)      1.0 interior / 0.0 pad ring & pad cols
      refs[2 + 3l + 0]   w_ref     (9*GP, C_in)   tap-stacked conv weight (M-side taps;
                                                   rows [t*GP+G, (t+1)*GP) are zero pad)
      refs[2 + 3l + 1]   gamma_ref (C_in, 1)
      refs[2 + 3l + 2]   beta_ref  (C_in, 1)
      refs[2 + 3L]       out_ref   (C_final, NSP) doubles as the activation buffer
      refs[2 + 3L + 1]   sum_ref   (C_final, 1)   cached per-channel sums
      refs[2 + 3L + 2]   sq_ref    (C_final, 1)   cached per-channel sum-of-squares
    where NSP = round_up(N*(H+2)*(W+2), 128).
    """
    Wp = W + 2

    x_ref = refs[0]
    mask_ref = refs[1]
    layer_refs = refs[2:2 + 3 * L]
    out_ref = refs[2 + 3 * L]
    sum_ref = refs[2 + 3 * L + 1]
    sq_ref = refs[2 + 3 * L + 2]

    mask = mask_ref[...]                                   # (1, NSP)
    inv_cnt = 1.0 / float(N * H * W)
    # Flattened-spatial offset of tap (kh, kw).  For interior output pixels the read
    # stays inside the same batch element's padded slab, so the roll wrap-around only
    # touches masked (ring / lane-pad) output positions.
    offsets = [(kh - 1) * Wp + (kw - 1) for kh in range(3) for kw in range(3)]

    # Seed the activation buffer and the cached statistics with the input channels.
    x = x_ref[...]                                         # (C0, NSP)
    out_ref[0:C0, :] = x
    sum_ref[0:C0, :] = jnp.sum(x, axis=1, keepdims=True)
    sq_ref[0:C0, :] = jnp.sum(x * x, axis=1, keepdims=True)

    for l in range(L):
        C_in = C0 + l * G
        w_ref = layer_refs[3 * l]
        gamma_ref = layer_refs[3 * l + 1]
        beta_ref = layer_refs[3 * l + 2]

        act = out_ref[0:C_in, :]                           # (C_in, NSP)

        # Training-mode (biased) batch statistics from the cached per-channel sums.
        # Padding ring / lane-pad columns are exactly zero, so full-row sums equal
        # interior sums; count = N*H*W.
        # TODO(synk): single-pass E[x^2]-mean^2 variance; fine at 1e-3 for this data.
        mean = sum_ref[0:C_in, :] * inv_cnt                # (C_in, 1)
        var = sq_ref[0:C_in, :] * inv_cnt - mean * mean
        scale = gamma_ref[...] * jax.lax.rsqrt(var + eps)  # (C_in, 1)
        shift = beta_ref[...] - mean * scale

        # BN + ReLU; re-zero the ring (Conv2d zero-pads ReLU(BN(x))).
        y = jnp.maximum(act * scale + shift, 0.0) * mask   # (C_in, NSP)

        # ONE MXU matmul per layer: taps stacked on the output (M) dim.
        partial = jnp.dot(w_ref[...], y,
                          preferred_element_type=jnp.float32)   # (9*GP, NSP)

        # Output-side tap shifts via the XLU; accumulate the 9 GP-row slabs.
        acc = None
        for t, d in enumerate(offsets):
            slab = partial[t * GP:(t + 1) * GP, :]          # sublane-tile aligned slice
            if d != 0:
                slab = pltpu.roll(slab, shift=(-d) % NS_pad, axis=1)
            acc = slab if acc is None else acc + slab

        # Keep the new channels' ring / lane-pad exactly zero (needed for the next
        # layer's stats and its conv zero padding).
        newch = acc[0:G, :] * mask                          # (G, NSP)
        out_ref[C_in:C_in + G, :] = newch

        if l + 1 < L:  # cache stats of the newly appended channels for later layers
            sum_ref[C_in:C_in + G, :] = jnp.sum(newch, axis=1, keepdims=True)
            sq_ref[C_in:C_in + G, :] = jnp.sum(newch * newch, axis=1, keepdims=True)


def _dense_block_pallas(x_flat, mask_flat, layer_inputs, *,
                        N, H, W, C0, G, GP, L, eps, NS_pad):
    C_final = C0 + L * G

    kern = functools.partial(_dense_block_kernel,
                             N=N, H=H, W=W, C0=C0, G=G, GP=GP, L=L, eps=eps,
                             NS_pad=NS_pad)

    in_specs = [pl.BlockSpec((C0, NS_pad), lambda i: (0, 0)),
                pl.BlockSpec((1, NS_pad), lambda i: (0, 0))]
    flat_inputs = [x_flat, mask_flat]
    for (w_stack, gamma2, beta2) in layer_inputs:
        in_specs += [pl.BlockSpec(w_stack.shape, lambda i: (0, 0)),
                     pl.BlockSpec(gamma2.shape, lambda i: (0, 0)),
                     pl.BlockSpec(beta2.shape, lambda i: (0, 0))]
        flat_inputs += [w_stack, gamma2, beta2]

    return pl.pallas_call(
        kern,
        out_shape=jax.ShapeDtypeStruct((C_final, NS_pad), jnp.float32),
        grid=(1,),
        in_specs=in_specs,
        out_specs=pl.BlockSpec((C_final, NS_pad), lambda i: (0, 0)),
        scratch_shapes=[pltpu.VMEM((C_final, 1), jnp.float32),   # cached sums
                        pltpu.VMEM((C_final, 1), jnp.float32)],  # cached sum-of-squares
        compiler_params=pltpu.CompilerParams(dimension_semantics=("arbitrary",)),
    )(*flat_inputs)


def dense_block_forward(x_nchw, params, eps=1e-5):
    """DenseBlock forward.  params: list of (gamma, beta, conv_w_OIHW) per layer."""
    N, C0, H, W = x_nchw.shape
    L = len(params)
    G = params[0][2].shape[0]
    GP = ((G + 7) // 8) * 8                    # sublane-aligned per-tap row block
    Hp, Wp = H + 2, W + 2
    NS = N * Hp * Wp
    NS_pad = ((NS + 127) // 128) * 128         # lane-dense width (648 -> 768)

    # Pad ONCE (zero ring) and flatten to (C0, NSP): channels on sublanes,
    # batch + padded spatial on the 128-lane axis; extra lane-pad columns are zero.
    xpad = jnp.pad(x_nchw.astype(jnp.float32), ((0, 0), (0, 0), (1, 1), (1, 1)))
    x_flat = jnp.transpose(xpad, (1, 0, 2, 3)).reshape(C0, NS)
    x_flat = jnp.pad(x_flat, ((0, 0), (0, NS_pad - NS)))

    interior = jnp.pad(jnp.ones((H, W), jnp.float32), ((1, 1), (1, 1)))
    mask_flat = jnp.tile(interior[None], (N, 1, 1)).reshape(1, NS)
    mask_flat = jnp.pad(mask_flat, ((0, 0), (0, NS_pad - NS)))

    layer_inputs = []
    for gamma, beta, w in params:
        C_in = w.shape[1]
        # OIHW -> (tap, O, I), pad O to GP with explicit zeros (never garbage: the pad
        # rows multiply activations inside the matmul), stack taps on the M dim.
        w_taps = jnp.transpose(w.astype(jnp.float32), (2, 3, 0, 1)).reshape(9, G, C_in)
        w_taps = jnp.pad(w_taps, ((0, 0), (0, GP - G), (0, 0)))
        w_stack = w_taps.reshape(9 * GP, C_in)
        layer_inputs.append((w_stack,
                             gamma.reshape(C_in, 1).astype(jnp.float32),
                             beta.reshape(C_in, 1).astype(jnp.float32)))

    out_flat = _dense_block_pallas(x_flat, mask_flat, layer_inputs,
                                   N=N, H=H, W=W, C0=C0, G=G, GP=GP, L=L, eps=eps,
                                   NS_pad=NS_pad)

    # (C_final, NSP) -> NCHW interior.  Cheap one-time XLA reshuffle (~40 KB).
    C_final = C0 + L * G
    out = out_flat[:, :NS].reshape(C_final, N, Hp, Wp)
    out = jnp.transpose(out, (1, 0, 2, 3))[:, :, 1:H + 1, 1:W + 1]
    return out
    # TODO(synk): dropout path (dropRate > 0) and BN running-stat updates are not
    # implemented; default dropRate=0.0 forward with batch stats matches PyTorch .train().


def _ref_forward(x_nchw, params, eps=1e-5):
    """Pure-JAX reference (NCHW, matches PyTorch semantics)."""
    x = x_nchw
    for gamma, beta, w in params:
        mean = jnp.mean(x, axis=(0, 2, 3))
        var = jnp.mean((x - mean[None, :, None, None]) ** 2, axis=(0, 2, 3))
        xn = (x - mean[None, :, None, None]) / jnp.sqrt(var + eps)[None, :, None, None]
        y = jnp.maximum(gamma[None, :, None, None] * xn + beta[None, :, None, None], 0.0)
        out = jax.lax.conv_general_dilated(
            y, w, window_strides=(1, 1), padding=((1, 1), (1, 1)),
            dimension_numbers=("NCHW", "OIHW", "NCHW"))
        x = jnp.concatenate([x, out], axis=1)
    return x


if __name__ == "__main__":
    nb_layers, in_planes, growth_rate = 3, 4, 4
    N, H, W = 2, 16, 16

    key = jax.random.PRNGKey(0)
    k_x, k_p = jax.random.split(key)
    x = jax.random.normal(k_x, (N, in_planes, H, W), jnp.float32)

    params = []
    pkeys = jax.random.split(k_p, nb_layers)
    for i in range(nb_layers):
        c_in = in_planes + i * growth_rate
        kg, kb, kw = jax.random.split(pkeys[i], 3)
        gamma = 1.0 + 0.1 * jax.random.normal(kg, (c_in,), jnp.float32)
        beta = 0.1 * jax.random.normal(kb, (c_in,), jnp.float32)
        w = jax.random.normal(kw, (growth_rate, c_in, 3, 3), jnp.float32) * \
            (2.0 / (9.0 * growth_rate)) ** 0.5
        params.append((gamma, beta, w))

    fwd = jax.jit(dense_block_forward)
    out = jax.block_until_ready(fwd(x, params))
    ref = _ref_forward(x, params)

    assert out.shape == (N, in_planes + nb_layers * growth_rate, H, W), out.shape
    max_err = float(jnp.max(jnp.abs(out - ref)))
    assert max_err < 1e-3, f"max abs error {max_err}"
    print("KERNEL_OK")
</pallas_src>

<mosaic_0001>
module attributes {stable_mosaic.version = 11 : i64} {
  func.func @_dense_block_kernel(%arg0: i32, %arg1: memref<4x768xf32, #tpu.memory_space<vmem>>, %arg2: memref<1x768xf32, #tpu.memory_space<vmem>>, %arg3: memref<72x4xf32, #tpu.memory_space<vmem>>, %arg4: memref<4x1xf32, #tpu.memory_space<vmem>>, %arg5: memref<4x1xf32, #tpu.memory_space<vmem>>, %arg6: memref<72x8xf32, #tpu.memory_space<vmem>>, %arg7: memref<8x1xf32, #tpu.memory_space<vmem>>, %arg8: memref<8x1xf32, #tpu.memory_space<vmem>>, %arg9: memref<72x12xf32, #tpu.memory_space<vmem>>, %arg10: memref<12x1xf32, #tpu.memory_space<vmem>>, %arg11: memref<12x1xf32, #tpu.memory_space<vmem>>, %arg12: memref<16x768xf32, #tpu.memory_space<vmem>>, %arg13: memref<16x1xf32, #tpu.memory_space<vmem>>, %arg14: memref<16x1xf32, #tpu.memory_space<vmem>>) attributes {dimension_semantics = [#tpu.dimension_semantics<arbitrary>], iteration_bounds = array<i64: 1>, scalar_prefetch = 0 : i64, scratch_operands = 2 : i64, tpu.core_type = #tpu.core_type<tc>, window_params = [{pipeline_mode = #tpu.pipeline_mode<synchronous>, transform_indices = @transform_0, window_bounds = array<i64: 4, 768>}, {pipeline_mode = #tpu.pipeline_mode<synchronous>, transform_indices = @transform_1, window_bounds = array<i64: 1, 768>}, {pipeline_mode = #tpu.pipeline_mode<synchronous>, transform_indices = @transform_2, window_bounds = array<i64: 72, 4>}, {pipeline_mode = #tpu.pipeline_mode<synchronous>, transform_indices = @transform_3, window_bounds = array<i64: 4, 1>}, {pipeline_mode = #tpu.pipeline_mode<synchronous>, transform_indices = @transform_4, window_bounds = array<i64: 4, 1>}, {pipeline_mode = #tpu.pipeline_mode<synchronous>, transform_indices = @transform_5, window_bounds = array<i64: 72, 8>}, {pipeline_mode = #tpu.pipeline_mode<synchronous>, transform_indices = @transform_6, window_bounds = array<i64: 8, 1>}, {pipeline_mode = #tpu.pipeline_mode<synchronous>, transform_indices = @transform_7, window_bounds = array<i64: 8, 1>}, {pipeline_mode = #tpu.pipeline_mode<synchronous>, transform_indices = @transform_8, window_bounds = array<i64: 72, 12>}, {pipeline_mode = #tpu.pipeline_mode<synchronous>, transform_indices = @transform_9, window_bounds = array<i64: 12, 1>}, {pipeline_mode = #tpu.pipeline_mode<synchronous>, transform_indices = @transform_10, window_bounds = array<i64: 12, 1>}, {pipeline_mode = #tpu.pipeline_mode<synchronous>, transform_indices = @transform_11, window_bounds = array<i64: 16, 768>}]} {
    %c0 = arith.constant 0 : index
    %c0_0 = arith.constant 0 : index
    %0 = vector.load %arg2[%c0, %c0_0] : memref<1x768xf32, #tpu.memory_space<vmem>>, vector<1x768xf32>
    %c0_1 = arith.constant 0 : index
    %c0_2 = arith.constant 0 : index
    %1 = vector.load %arg1[%c0_1, %c0_2] : memref<4x768xf32, #tpu.memory_space<vmem>>, vector<4x768xf32>
    %c0_3 = arith.constant 0 : index
    %c0_4 = arith.constant 0 : index
    %2 = vector.load %arg12[%c0_3, %c0_4] : memref<16x768xf32, #tpu.memory_space<vmem>>, vector<4x768xf32>
    tpu.vector_store %arg12[%c0_3, %c0_4], %1 {strides = array<i32>} : memref<16x768xf32, #tpu.memory_space<vmem>>, vector<4x768xf32>,
    %cst = arith.constant dense<0.000000e+00> : vector<4xf32>
    %3 = vector.multi_reduction <add>, %1, %cst [1] : vector<4x768xf32> to vector<4xf32>
    %4 = vector.shape_cast %3 : vector<4xf32> to vector<4x1xf32>
    %c0_5 = arith.constant 0 : index
    %c0_6 = arith.constant 0 : index
    %5 = vector.load %arg13[%c0_5, %c0_6] : memref<16x1xf32, #tpu.memory_space<vmem>>, vector<4x1xf32>
    tpu.vector_store %arg13[%c0_5, %c0_6], %4 {strides = array<i32>} : memref<16x1xf32, #tpu.memory_space<vmem>>, vector<4x1xf32>,
    %6 = arith.mulf %1, %1 : vector<4x768xf32>
    %cst_7 = arith.constant dense<0.000000e+00> : vector<4xf32>
    %7 = vector.multi_reduction <add>, %6, %cst_7 [1] : vector<4x768xf32> to vector<4xf32>
    %8 = vector.shape_cast %7 : vector<4xf32> to vector<4x1xf32>
    %c0_8 = arith.constant 0 : index
    %c0_9 = arith.constant 0 : index
    %9 = vector.load %arg14[%c0_8, %c0_9] : memref<16x1xf32, #tpu.memory_space<vmem>>, vector<4x1xf32>
    tpu.vector_store %arg14[%c0_8, %c0_9], %8 {strides = array<i32>} : memref<16x1xf32, #tpu.memory_space<vmem>>, vector<4x1xf32>,
    %c0_10 = arith.constant 0 : index
    %c0_11 = arith.constant 0 : index
    %10 = vector.load %arg12[%c0_10, %c0_11] : memref<16x768xf32, #tpu.memory_space<vmem>>, vector<4x768xf32>
    %c0_12 = arith.constant 0 : index
    %c0_13 = arith.constant 0 : index
    %11 = vector.load %arg13[%c0_12, %c0_13] : memref<16x1xf32, #tpu.memory_space<vmem>>, vector<4x1xf32>
    %cst_14 = arith.constant 0.001953125 : f32
    %12 = vector.broadcast %cst_14 : f32 to vector<4x1xf32>
    %13 = arith.mulf %11, %12 : vector<4x1xf32>
    %c0_15 = arith.constant 0 : index
    %c0_16 = arith.constant 0 : index
    %14 = vector.load %arg14[%c0_15, %c0_16] : memref<16x1xf32, #tpu.memory_space<vmem>>, vector<4x1xf32>
    %cst_17 = arith.constant 0.001953125 : f32
    %15 = vector.broadcast %cst_17 : f32 to vector<4x1xf32>
    %16 = arith.mulf %14, %15 : vector<4x1xf32>
    %17 = arith.mulf %13, %13 : vector<4x1xf32>
    %18 = arith.subf %16, %17 : vector<4x1xf32>
    %c0_18 = arith.constant 0 : index
    %c0_19 = arith.constant 0 : index
    %19 = vector.load %arg4[%c0_18, %c0_19] : memref<4x1xf32, #tpu.memory_space<vmem>>, vector<4x1xf32>
    %cst_20 = arith.constant 9.99999974E-6 : f32
    %20 = vector.broadcast %cst_20 : f32 to vector<4x1xf32>
    %21 = arith.addf %18, %20 : vector<4x1xf32>
    %22 = math.rsqrt %21 : vector<4x1xf32>
    %23 = arith.mulf %19, %22 : vector<4x1xf32>
    %c0_21 = arith.constant 0 : index
    %c0_22 = arith.constant 0 : index
    %24 = vector.load %arg5[%c0_21, %c0_22] : memref<4x1xf32, #tpu.memory_space<vmem>>, vector<4x1xf32>
    %25 = arith.mulf %13, %23 : vector<4x1xf32>
    %26 = arith.subf %24, %25 : vector<4x1xf32>
    %27 = vector.broadcast %23 : vector<4x1xf32> to vector<4x768xf32>
    %28 = arith.mulf %10, %27 : vector<4x768xf32>
    %29 = vector.broadcast %26 : vector<4x1xf32> to vector<4x768xf32>
    %30 = arith.addf %28, %29 : vector<4x768xf32>
    %cst_23 = arith.constant 0.000000e+00 : f32
    %31 = vector.broadcast %cst_23 : f32 to vector<4x768xf32>
    %32 = arith.maximumf %30, %31 : vector<4x768xf32>
    %33 = vector.broadcast %0 : vector<1x768xf32> to vector<4x768xf32>
    %34 = arith.mulf %32, %33 : vector<4x768xf32>
    %c0_24 = arith.constant 0 : index
    %c0_25 = arith.constant 0 : index
    %35 = vector.load %arg3[%c0_24, %c0_25] : memref<72x4xf32, #tpu.memory_space<vmem>>, vector<72x4xf32>
    %cst_26 = arith.constant dense<0.000000e+00> : vector<72x768xf32>
    %36 = tpu.matmul %35, %34, %cst_26 {dimension_numbers = #tpu.dot_dimension_numbers<[1], [0], [0], [1], [0, 0, 1, 1], [], []>} : vector<72x4xf32>, vector<4x768xf32>, vector<72x768xf32> -> vector<72x768xf32>
    %37 = vector.extract_strided_slice %36 {offsets = [0, 0], sizes = [8, 768], strides = [1, 1]} : vector<72x768xf32> to vector<8x768xf32>
    %c19_i32 = arith.constant 19 : i32
    %38 = tpu.dynamic_rotate %37 by %c19_i32 dim 1 : vector<8x768xf32>, i32 -> vector<8x768xf32>
    %39 = vector.extract_strided_slice %36 {offsets = [8, 0], sizes = [8, 768], strides = [1, 1]} : vector<72x768xf32> to vector<8x768xf32>
    %c18_i32 = arith.constant 18 : i32
    %40 = tpu.dynamic_rotate %39 by %c18_i32 dim 1 : vector<8x768xf32>, i32 -> vector<8x768xf32>
    %41 = arith.addf %38, %40 : vector<8x768xf32>
    %42 = vector.extract_strided_slice %36 {offsets = [16, 0], sizes = [8, 768], strides = [1, 1]} : vector<72x768xf32> to vector<8x768xf32>
    %c17_i32 = arith.constant 17 : i32
    %43 = tpu.dynamic_rotate %42 by %c17_i32 dim 1 : vector<8x768xf32>, i32 -> vector<8x768xf32>
    %44 = arith.addf %41, %43 : vector<8x768xf32>
    %45 = vector.extract_strided_slice %36 {offsets = [24, 0], sizes = [8, 768], strides = [1, 1]} : vector<72x768xf32> to vector<8x768xf32>
    %c1_i32 = arith.constant 1 : i32
    %46 = tpu.dynamic_rotate %45 by %c1_i32 dim 1 : vector<8x768xf32>, i32 -> vector<8x768xf32>
    %47 = arith.addf %44, %46 : vector<8x768xf32>
    %48 = vector.extract_strided_slice %36 {offsets = [32, 0], sizes = [8, 768], strides = [1, 1]} : vector<72x768xf32> to vector<8x768xf32>
    %49 = arith.addf %47, %48 : vector<8x768xf32>
    %50 = vector.extract_strided_slice %36 {offsets = [40, 0], sizes = [8, 768], strides = [1, 1]} : vector<72x768xf32> to vector<8x768xf32>
    %c767_i32 = arith.constant 767 : i32
    %51 = tpu.dynamic_rotate %50 by %c767_i32 dim 1 : vector<8x768xf32>, i32 -> vector<8x768xf32>
    %52 = arith.addf %49, %51 : vector<8x768xf32>
    %53 = vector.extract_strided_slice %36 {offsets = [48, 0], sizes = [8, 768], strides = [1, 1]} : vector<72x768xf32> to vector<8x768xf32>
    %c751_i32 = arith.constant 751 : i32
    %54 = tpu.dynamic_rotate %53 by %c751_i32 dim 1 : vector<8x768xf32>, i32 -> vector<8x768xf32>
    %55 = arith.addf %52, %54 : vector<8x768xf32>
    %56 = vector.extract_strided_slice %36 {offsets = [56, 0], sizes = [8, 768], strides = [1, 1]} : vector<72x768xf32> to vector<8x768xf32>
    %c750_i32 = arith.constant 750 : i32
    %57 = tpu.dynamic_rotate %56 by %c750_i32 dim 1 : vector<8x768xf32>, i32 -> vector<8x768xf32>
    %58 = arith.addf %55, %57 : vector<8x768xf32>
    %59 = vector.extract_strided_slice %36 {offsets = [64, 0], sizes = [8, 768], strides = [1, 1]} : vector<72x768xf32> to vector<8x768xf32>
    %c749_i32 = arith.constant 749 : i32
    %60 = tpu.dynamic_rotate %59 by %c749_i32 dim 1 : vector<8x768xf32>, i32 -> vector<8x768xf32>
    %61 = arith.addf %58, %60 : vector<8x768xf32>
    %62 = vector.extract_strided_slice %61 {offsets = [0, 0], sizes = [4, 768], strides = [1, 1]} : vector<8x768xf32> to vector<4x768xf32>
    %63 = vector.broadcast %0 : vector<1x768xf32> to vector<4x768xf32>
    %64 = arith.mulf %62, %63 : vector<4x768xf32>
    %c4 = arith.constant 4 : index
    %c0_27 = arith.constant 0 : index
    %65 = vector.load %arg12[%c4, %c0_27] : memref<16x768xf32, #tpu.memory_space<vmem>>, vector<4x768xf32>
    tpu.vector_store %arg12[%c4, %c0_27], %64 {strides = array<i32>} : memref<16x768xf32, #tpu.memory_space<vmem>>, vector<4x768xf32>,
    %cst_28 = arith.constant dense<0.000000e+00> : vector<4xf32>
    %66 = vector.multi_reduction <add>, %64, %cst_28 [1] : vector<4x768xf32> to vector<4xf32>
    %67 = vector.shape_cast %66 : vector<4xf32> to vector<4x1xf32>
    %c4_29 = arith.constant 4 : index
    %c0_30 = arith.constant 0 : index
    %68 = vector.load %arg13[%c4_29, %c0_30] : memref<16x1xf32, #tpu.memory_space<vmem>>, vector<4x1xf32>
    tpu.vector_store %arg13[%c4_29, %c0_30], %67 {strides = array<i32>} : memref<16x1xf32, #tpu.memory_space<vmem>>, vector<4x1xf32>,
    %69 = arith.mulf %64, %64 : vector<4x768xf32>
    %cst_31 = arith.constant dense<0.000000e+00> : vector<4xf32>
    %70 = vector.multi_reduction <add>, %69, %cst_31 [1] : vector<4x768xf32> to vector<4xf32>
    %71 = vector.shape_cast %70 : vector<4xf32> to vector<4x1xf32>
    %c4_32 = arith.constant 4 : index
    %c0_33 = arith.constant 0 : index
    %72 = vector.load %arg14[%c4_32, %c0_33] : memref<16x1xf32, #tpu.memory_space<vmem>>, vector<4x1xf32>
    tpu.vector_store %arg14[%c4_32, %c0_33], %71 {strides = array<i32>} : memref<16x1xf32, #tpu.memory_space<vmem>>, vector<4x1xf32>,
    %c0_34 = arith.constant 0 : index
    %c0_35 = arith.constant 0 : index
    %73 = vector.load %arg12[%c0_34, %c0_35] : memref<16x768xf32, #tpu.memory_space<vmem>>, vector<8x768xf32>
    %c0_36 = arith.constant 0 : index
    %c0_37 = arith.constant 0 : index
    %74 = vector.load %arg13[%c0_36, %c0_37] : memref<16x1xf32, #tpu.memory_space<vmem>>, vector<8x1xf32>
    %cst_38 = arith.constant 0.001953125 : f32
    %75 = vector.broadcast %cst_38 : f32 to vector<8x1xf32>
    %76 = arith.mulf %74, %75 : vector<8x1xf32>
    %c0_39 = arith.constant 0 : index
    %c0_40 = arith.constant 0 : index
    %77 = vector.load %arg14[%c0_39, %c0_40] : memref<16x1xf32, #tpu.memory_space<vmem>>, vector<8x1xf32>
    %cst_41 = arith.constant 0.001953125 : f32
    %78 = vector.broadcast %cst_41 : f32 to vector<8x1xf32>
    %79 = arith.mulf %77, %78 : vector<8x1xf32>
    %80 = arith.mulf %76, %76 : vector<8x1xf32>
    %81 = arith.subf %79, %80 : vector<8x1xf32>
    %c0_42 = arith.constant 0 : index
    %c0_43 = arith.constant 0 : index
    %82 = vector.load %arg7[%c0_42, %c0_43] : memref<8x1xf32, #tpu.memory_space<vmem>>, vector<8x1xf32>
    %cst_44 = arith.constant 9.99999974E-6 : f32
    %83 = vector.broadcast %cst_44 : f32 to vector<8x1xf32>
    %84 = arith.addf %81, %83 : vector<8x1xf32>
    %85 = math.rsqrt %84 : vector<8x1xf32>
    %86 = arith.mulf %82, %85 : vector<8x1xf32>
    %c0_45 = arith.constant 0 : index
    %c0_46 = arith.constant 0 : index
    %87 = vector.load %arg8[%c0_45, %c0_46] : memref<8x1xf32, #tpu.memory_space<vmem>>, vector<8x1xf32>
    %88 = arith.mulf %76, %86 : vector<8x1xf32>
    %89 = arith.subf %87, %88 : vector<8x1xf32>
    %90 = vector.broadcast %86 : vector<8x1xf32> to vector<8x768xf32>
    %91 = arith.mulf %73, %90 : vector<8x768xf32>
    %92 = vector.broadcast %89 : vector<8x1xf32> to vector<8x768xf32>
    %93 = arith.addf %91, %92 : vector<8x768xf32>
    %cst_47 = arith.constant 0.000000e+00 : f32
    %94 = vector.broadcast %cst_47 : f32 to vector<8x768xf32>
    %95 = arith.maximumf %93, %94 : vector<8x768xf32>
    %96 = vector.broadcast %0 : vector<1x768xf32> to vector<8x768xf32>
    %97 = arith.mulf %95, %96 : vector<8x768xf32>
    %c0_48 = arith.constant 0 : index
    %c0_49 = arith.constant 0 : index
    %98 = vector.load %arg6[%c0_48, %c0_49] : memref<72x8xf32, #tpu.memory_space<vmem>>, vector<72x8xf32>
    %cst_50 = arith.constant dense<0.000000e+00> : vector<72x768xf32>
    %99 = tpu.matmul %98, %97, %cst_50 {dimension_numbers = #tpu.dot_dimension_numbers<[1], [0], [0], [1], [0, 0, 1, 1], [], []>} : vector<72x8xf32>, vector<8x768xf32>, vector<72x768xf32> -> vector<72x768xf32>
    %100 = vector.extract_strided_slice %99 {offsets = [0, 0], sizes = [8, 768], strides = [1, 1]} : vector<72x768xf32> to vector<8x768xf32>
    %c19_i32_51 = arith.constant 19 : i32
    %101 = tpu.dynamic_rotate %100 by %c19_i32_51 dim 1 : vector<8x768xf32>, i32 -> vector<8x768xf32>
    %102 = vector.extract_strided_slice %99 {offsets = [8, 0], sizes = [8, 768], strides = [1, 1]} : vector<72x768xf32> to vector<8x768xf32>
    %c18_i32_52 = arith.constant 18 : i32
    %103 = tpu.dynamic_rotate %102 by %c18_i32_52 dim 1 : vector<8x768xf32>, i32 -> vector<8x768xf32>
    %104 = arith.addf %101, %103 : vector<8x768xf32>
    %105 = vector.extract_strided_slice %99 {offsets = [16, 0], sizes = [8, 768], strides = [1, 1]} : vector<72x768xf32> to vector<8x768xf32>
    %c17_i32_53 = arith.constant 17 : i32
    %106 = tpu.dynamic_rotate %105 by %c17_i32_53 dim 1 : vector<8x768xf32>, i32 -> vector<8x768xf32>
    %107 = arith.addf %104, %106 : vector<8x768xf32>
    %108 = vector.extract_strided_slice %99 {offsets = [24, 0], sizes = [8, 768], strides = [1, 1]} : vector<72x768xf32> to vector<8x768xf32>
    %c1_i32_54 = arith.constant 1 : i32
    %109 = tpu.dynamic_rotate %108 by %c1_i32_54 dim 1 : vector<8x768xf32>, i32 -> vector<8x768xf32>
    %110 = arith.addf %107, %109 : vector<8x768xf32>
    %111 = vector.extract_strided_slice %99 {offsets = [32, 0], sizes = [8, 768], strides = [1, 1]} : vector<72x768xf32> to vector<8x768xf32>
    %112 = arith.addf %110, %111 : vector<8x768xf32>
    %113 = vector.extract_strided_slice %99 {offsets = [40, 0], sizes = [8, 768], strides = [1, 1]} : vector<72x768xf32> to vector<8x768xf32>
    %c767_i32_55 = arith.constant 767 : i32
    %114 = tpu.dynamic_rotate %113 by %c767_i32_55 dim 1 : vector<8x768xf32>, i32 -> vector<8x768xf32>
    %115 = arith.addf %112, %114 : vector<8x768xf32>
    %116 = vector.extract_strided_slice %99 {offsets = [48, 0], sizes = [8, 768], strides = [1, 1]} : vector<72x768xf32> to vector<8x768xf32>
    %c751_i32_56 = arith.constant 751 : i32
    %117 = tpu.dynamic_rotate %116 by %c751_i32_56 dim 1 : vector<8x768xf32>, i32 -> vector<8x768xf32>
    %118 = arith.addf %115, %117 : vector<8x768xf32>
    %119 = vector.extract_strided_slice %99 {offsets = [56, 0], sizes = [8, 768], strides = [1, 1]} : vector<72x768xf32> to vector<8x768xf32>
    %c750_i32_57 = arith.constant 750 : i32
    %120 = tpu.dynamic_rotate %119 by %c750_i32_57 dim 1 : vector<8x768xf32>, i32 -> vector<8x768xf32>
    %121 = arith.addf %118, %120 : vector<8x768xf32>
    %122 = vector.extract_strided_slice %99 {offsets = [64, 0], sizes = [8, 768], strides = [1, 1]} : vector<72x768xf32> to vector<8x768xf32>
    %c749_i32_58 = arith.constant 749 : i32
    %123 = tpu.dynamic_rotate %122 by %c749_i32_58 dim 1 : vector<8x768xf32>, i32 -> vector<8x768xf32>
    %124 = arith.addf %121, %123 : vector<8x768xf32>
    %125 = vector.extract_strided_slice %124 {offsets = [0, 0], sizes = [4, 768], strides = [1, 1]} : vector<8x768xf32> to vector<4x768xf32>
    %126 = vector.broadcast %0 : vector<1x768xf32> to vector<4x768xf32>
    %127 = arith.mulf %125, %126 : vector<4x768xf32>
    %c8 = arith.constant 8 : index
    %c0_59 = arith.constant 0 : index
    %128 = vector.load %arg12[%c8, %c0_59] : memref<16x768xf32, #tpu.memory_space<vmem>>, vector<4x768xf32>
    tpu.vector_store %arg12[%c8, %c0_59], %127 {strides = array<i32>} : memref<16x768xf32, #tpu.memory_space<vmem>>, vector<4x768xf32>,
    %cst_60 = arith.constant dense<0.000000e+00> : vector<4xf32>
    %129 = vector.multi_reduction <add>, %127, %cst_60 [1] : vector<4x768xf32> to vector<4xf32>
    %130 = vector.shape_cast %129 : vector<4xf32> to vector<4x1xf32>
    %c8_61 = arith.constant 8 : index
    %c0_62 = arith.constant 0 : index
    %131 = vector.load %arg13[%c8_61, %c0_62] : memref<16x1xf32, #tpu.memory_space<vmem>>, vector<4x1xf32>
    tpu.vector_store %arg13[%c8_61, %c0_62], %130 {strides = array<i32>} : memref<16x1xf32, #tpu.memory_space<vmem>>, vector<4x1xf32>,
    %132 = arith.mulf %127, %127 : vector<4x768xf32>
    %cst_63 = arith.constant dense<0.000000e+00> : vector<4xf32>
    %133 = vector.multi_reduction <add>, %132, %cst_63 [1] : vector<4x768xf32> to vector<4xf32>
    %134 = vector.shape_cast %133 : vector<4xf32> to vector<4x1xf32>
    %c8_64 = arith.constant 8 : index
    %c0_65 = arith.constant 0 : index
    %135 = vector.load %arg14[%c8_64, %c0_65] : memref<16x1xf32, #tpu.memory_space<vmem>>, vector<4x1xf32>
    tpu.vector_store %arg14[%c8_64, %c0_65], %134 {strides = array<i32>} : memref<16x1xf32, #tpu.memory_space<vmem>>, vector<4x1xf32>,
    %c0_66 = arith.constant 0 : index
    %c0_67 = arith.constant 0 : index
    %136 = vector.load %arg12[%c0_66, %c0_67] : memref<16x768xf32, #tpu.memory_space<vmem>>, vector<12x768xf32>
    %c0_68 = arith.constant 0 : index
    %c0_69 = arith.constant 0 : index
    %137 = vector.load %arg13[%c0_68, %c0_69] : memref<16x1xf32, #tpu.memory_space<vmem>>, vector<12x1xf32>
    %cst_70 = arith.constant 0.001953125 : f32
    %138 = vector.broadcast %cst_70 : f32 to vector<12x1xf32>
    %139 = arith.mulf %137, %138 : vector<12x1xf32>
    %c0_71 = arith.constant 0 : index
    %c0_72 = arith.constant 0 : index
    %140 = vector.load %arg14[%c0_71, %c0_72] : memref<16x1xf32, #tpu.memory_space<vmem>>, vector<12x1xf32>
    %cst_73 = arith.constant 0.001953125 : f32
    %141 = vector.broadcast %cst_73 : f32 to vector<12x1xf32>
    %142 = arith.mulf %140, %141 : vector<12x1xf32>
    %143 = arith.mulf %139, %139 : vector<12x1xf32>
    %144 = arith.subf %142, %143 : vector<12x1xf32>
    %c0_74 = arith.constant 0 : index
    %c0_75 = arith.constant 0 : index
    %145 = vector.load %arg10[%c0_74, %c0_75] : memref<12x1xf32, #tpu.memory_space<vmem>>, vector<12x1xf32>
    %cst_76 = arith.constant 9.99999974E-6 : f32
    %146 = vector.broadcast %cst_76 : f32 to vector<12x1xf32>
    %147 = arith.addf %144, %146 : vector<12x1xf32>
    %148 = math.rsqrt %147 : vector<12x1xf32>
    %149 = arith.mulf %145, %148 : vector<12x1xf32>
    %c0_77 = arith.constant 0 : index
    %c0_78 = arith.constant 0 : index
    %150 = vector.load %arg11[%c0_77, %c0_78] : memref<12x1xf32, #tpu.memory_space<vmem>>, vector<12x1xf32>
    %151 = arith.mulf %139, %149 : vector<12x1xf32>
    %152 = arith.subf %150, %151 : vector<12x1xf32>
    %153 = vector.broadcast %149 : vector<12x1xf32> to vector<12x768xf32>
    %154 = arith.mulf %136, %153 : vector<12x768xf32>
    %155 = vector.broadcast %152 : vector<12x1xf32> to vector<12x768xf32>
    %156 = arith.addf %154, %155 : vector<12x768xf32>
    %cst_79 = arith.constant 0.000000e+00 : f32
    %157 = vector.broadcast %cst_79 : f32 to vector<12x768xf32>
    %158 = arith.maximumf %156, %157 : vector<12x768xf32>
    %159 = vector.broadcast %0 : vector<1x768xf32> to vector<12x768xf32>
    %160 = arith.mulf %158, %159 : vector<12x768xf32>
    %c0_80 = arith.constant 0 : index
    %c0_81 = arith.constant 0 : index
    %161 = vector.load %arg9[%c0_80, %c0_81] : memref<72x12xf32, #tpu.memory_space<vmem>>, vector<72x12xf32>
    %cst_82 = arith.constant dense<0.000000e+00> : vector<72x768xf32>
    %162 = tpu.matmul %161, %160, %cst_82 {dimension_numbers = #tpu.dot_dimension_numbers<[1], [0], [0], [1], [0, 0, 1, 1], [], []>} : vector<72x12xf32>, vector<12x768xf32>, vector<72x768xf32> -> vector<72x768xf32>
    %163 = vector.extract_strided_slice %162 {offsets = [0, 0], sizes = [8, 768], strides = [1, 1]} : vector<72x768xf32> to vector<8x768xf32>
    %c19_i32_83 = arith.constant 19 : i32
    %164 = tpu.dynamic_rotate %163 by %c19_i32_83 dim 1 : vector<8x768xf32>, i32 -> vector<8x768xf32>
    %165 = vector.extract_strided_slice %162 {offsets = [8, 0], sizes = [8, 768], strides = [1, 1]} : vector<72x768xf32> to vector<8x768xf32>
    %c18_i32_84 = arith.constant 18 : i32
    %166 = tpu.dynamic_rotate %165 by %c18_i32_84 dim 1 : vector<8x768xf32>, i32 -> vector<8x768xf32>
    %167 = arith.addf %164, %166 : vector<8x768xf32>
    %168 = vector.extract_strided_slice %162 {offsets = [16, 0], sizes = [8, 768], strides = [1, 1]} : vector<72x768xf32> to vector<8x768xf32>
    %c17_i32_85 = arith.constant 17 : i32
    %169 = tpu.dynamic_rotate %168 by %c17_i32_85 dim 1 : vector<8x768xf32>, i32 -> vector<8x768xf32>
    %170 = arith.addf %167, %169 : vector<8x768xf32>
    %171 = vector.extract_strided_slice %162 {offsets = [24, 0], sizes = [8, 768], strides = [1, 1]} : vector<72x768xf32> to vector<8x768xf32>
    %c1_i32_86 = arith.constant 1 : i32
    %172 = tpu.dynamic_rotate %171 by %c1_i32_86 dim 1 : vector<8x768xf32>, i32 -> vector<8x768xf32>
    %173 = arith.addf %170, %172 : vector<8x768xf32>
    %174 = vector.extract_strided_slice %162 {offsets = [32, 0], sizes = [8, 768], strides = [1, 1]} : vector<72x768xf32> to vector<8x768xf32>
    %175 = arith.addf %173, %174 : vector<8x768xf32>
    %176 = vector.extract_strided_slice %162 {offsets = [40, 0], sizes = [8, 768], strides = [1, 1]} : vector<72x768xf32> to vector<8x768xf32>
    %c767_i32_87 = arith.constant 767 : i32
    %177 = tpu.dynamic_rotate %176 by %c767_i32_87 dim 1 : vector<8x768xf32>, i32 -> vector<8x768xf32>
    %178 = arith.addf %175, %177 : vector<8x768xf32>
    %179 = vector.extract_strided_slice %162 {offsets = [48, 0], sizes = [8, 768], strides = [1, 1]} : vector<72x768xf32> to vector<8x768xf32>
    %c751_i32_88 = arith.constant 751 : i32
    %180 = tpu.dynamic_rotate %179 by %c751_i32_88 dim 1 : vector<8x768xf32>, i32 -> vector<8x768xf32>
    %181 = arith.addf %178, %180 : vector<8x768xf32>
    %182 = vector.extract_strided_slice %162 {offsets = [56, 0], sizes = [8, 768], strides = [1, 1]} : vector<72x768xf32> to vector<8x768xf32>
    %c750_i32_89 = arith.constant 750 : i32
    %183 = tpu.dynamic_rotate %182 by %c750_i32_89 dim 1 : vector<8x768xf32>, i32 -> vector<8x768xf32>
    %184 = arith.addf %181, %183 : vector<8x768xf32>
    %185 = vector.extract_strided_slice %162 {offsets = [64, 0], sizes = [8, 768], strides = [1, 1]} : vector<72x768xf32> to vector<8x768xf32>
    %c749_i32_90 = arith.constant 749 : i32
    %186 = tpu.dynamic_rotate %185 by %c749_i32_90 dim 1 : vector<8x768xf32>, i32 -> vector<8x768xf32>
    %187 = arith.addf %184, %186 : vector<8x768xf32>
    %188 = vector.extract_strided_slice %187 {offsets = [0, 0], sizes = [4, 768], strides = [1, 1]} : vector<8x768xf32> to vector<4x768xf32>
    %189 = vector.broadcast %0 : vector<1x768xf32> to vector<4x768xf32>
    %190 = arith.mulf %188, %189 : vector<4x768xf32>
    %c12 = arith.constant 12 : index
    %c0_91 = arith.constant 0 : index
    %191 = vector.load %arg12[%c12, %c0_91] : memref<16x768xf32, #tpu.memory_space<vmem>>, vector<4x768xf32>
    tpu.vector_store %arg12[%c12, %c0_91], %190 {strides = array<i32>} : memref<16x768xf32, #tpu.memory_space<vmem>>, vector<4x768xf32>,
    return
  }
  func.func @transform_0(%arg0: i32) -> (i32, i32) {
    %c0_i32 = arith.constant 0 : i32
    %c0_i32_0 = arith.constant 0 : i32
    %c0_i32_1 = arith.constant 0 : i32
    return %c0_i32, %c0_i32_0 : i32, i32
  }
  func.func @transform_1(%arg0: i32) -> (i32, i32) {
    %c0_i32 = arith.constant 0 : i32
    %c0_i32_0 = arith.constant 0 : i32
    %c0_i32_1 = arith.constant 0 : i32
    return %c0_i32, %c0_i32_0 : i32, i32
  }
  func.func @transform_2(%arg0: i32) -> (i32, i32) {
    %c0_i32 = arith.constant 0 : i32
    %c0_i32_0 = arith.constant 0 : i32
    %c0_i32_1 = arith.constant 0 : i32
    return %c0_i32, %c0_i32_0 : i32, i32
  }
  func.func @transform_3(%arg0: i32) -> (i32, i32) {
    %c0_i32 = arith.constant 0 : i32
    %c0_i32_0 = arith.constant 0 : i32
    %c0_i32_1 = arith.constant 0 : i32
    return %c0_i32, %c0_i32_0 : i32, i32
  }
  func.func @transform_4(%arg0: i32) -> (i32, i32) {
    %c0_i32 = arith.constant 0 : i32
    %c0_i32_0 = arith.constant 0 : i32
    %c0_i32_1 = arith.constant 0 : i32
    return %c0_i32, %c0_i32_0 : i32, i32
  }
  func.func @transform_5(%arg0: i32) -> (i32, i32) {
    %c0_i32 = arith.constant 0 : i32
    %c0_i32_0 = arith.constant 0 : i32
    %c0_i32_1 = arith.constant 0 : i32
    return %c0_i32, %c0_i32_0 : i32, i32
  }
  func.func @transform_6(%arg0: i32) -> (i32, i32) {
    %c0_i32 = arith.constant 0 : i32
    %c0_i32_0 = arith.constant 0 : i32
    %c0_i32_1 = arith.constant 0 : i32
    return %c0_i32, %c0_i32_0 : i32, i32
  }
  func.func @transform_7(%arg0: i32) -> (i32, i32) {
    %c0_i32 = arith.constant 0 : i32
    %c0_i32_0 = arith.constant 0 : i32
    %c0_i32_1 = arith.constant 0 : i32
    return %c0_i32, %c0_i32_0 : i32, i32
  }
  func.func @transform_8(%arg0: i32) -> (i32, i32) {
    %c0_i32 = arith.constant 0 : i32
    %c0_i32_0 = arith.constant 0 : i32
    %c0_i32_1 = arith.constant 0 : i32
    return %c0_i32, %c0_i32_0 : i32, i32
  }
  func.func @transform_9(%arg0: i32) -> (i32, i32) {
    %c0_i32 = arith.constant 0 : i32
    %c0_i32_0 = arith.constant 0 : i32
    %c0_i32_1 = arith.constant 0 : i32
    return %c0_i32, %c0_i32_0 : i32, i32
  }
  func.func @transform_10(%arg0: i32) -> (i32, i32) {
    %c0_i32 = arith.constant 0 : i32
    %c0_i32_0 = arith.constant 0 : i32
    %c0_i32_1 = arith.constant 0 : i32
    return %c0_i32, %c0_i32_0 : i32, i32
  }
  func.func @transform_11(%arg0: i32) -> (i32, i32) {
    %c0_i32 = arith.constant 0 : i32
    %c0_i32_0 = arith.constant 0 : i32
    %c0_i32_1 = arith.constant 0 : i32
    return %c0_i32, %c0_i32_0 : i32, i32
  }
}

</mosaic_0001>

<llo_original>
// kernel: tile.6
$region0: #{tile.6}
  #allocation0 [shape = 's32[1]{0}', space=sflag, size = 0x4, scoped, tag = 'scoped memory for tile.6']
  %s0 = inlined_call_operand.vmem [shape: f32[18,18], index: 0, kind: input, shape index: {}]
  %s1 = inlined_call_operand.vmem [shape: f32[2,1,1,18,1,18], index: 1, kind: output, shape index: {}]
  // Predicated region
  $region2: #{tile.6} parent=0 // pred_check
    _
  $region3: #{tile.6} parent=0 // pred_check_branch
    %3 = sbr.rel (0) target = $region5
  $region4: #{tile.6} parent=0 // pred_region
    _
  $region5: #{tile.6} parent=0 // pred_fallthru
    _
  %v4 = vld [vmem:[%s0] sm:$0xff]
  %5 = vst [vmem:[%s1] sm:$0xff] %v4
  %s6 = scalar_lea.vmem %s1, 24
  %7 = vst [vmem:[%s6] sm:$0xff] %v4
  %s8 = scalar_lea.vmem %s0, 8
  %v9 = vld [vmem:[%s8] sm:$0xff]
  %s10 = scalar_lea.vmem %s1, 8
  %11 = vst [vmem:[%s10] sm:$0xff] %v9
  %s12 = scalar_lea.vmem %s1, 32
  %13 = vst [vmem:[%s12] sm:$0xff] %v9
  %s14 = scalar_lea.vmem %s0, 16
  %v15 = vld [vmem:[%s14] sm:$0xff]
  %s16 = scalar_lea.vmem %s1, 16
  %17 = vst [vmem:[%s16] sm:$0xff] %v15
  %s18 = scalar_lea.vmem %s1, 40
  %19 = vst [vmem:[%s18] sm:$0xff] %v15

// kernel: tile.7
$region0: #{tile.7}
  %s0 = inlined_call_operand.vmem [shape: f32[2,1,1,18,1,18], index: 0, kind: input, shape index: {}]
  %s1 = inlined_call_operand.vmem [shape: f32[1,648], index: 1, kind: output, shape index: {}]
  $region1: #{tile.7} parent=0
    #allocation0 [shape = 'u8[24576]{0}', space=vmem, size = 0x6000, scoped, tag = 'scoped mem for output reshape']
    %v2 = vld [vmem:[%s0] sm:$0x1]
    %vm3 = vcmask 146432
    %4 = vst.msk [vmem:[#allocation0] sm:$0x1] %vm3, %v2
    %s5 = scalar_lea.vmem %s0, 7
    %v6 = vld [vmem:[%s5] sm:$0x1]
    %s7 = scalar_lea.vmem %s0, 7
    %v8 = vld [vmem:[%s7] sm:$0x1]
    %vm9 = vcmask 15360
    %v10 = vsel %vm9, %v8, %v6
    %11 = vrot.lane.b32.xlu0 %v10, 126
    %v12 = vpop.permute.xlu0 %11
    %vm13 = vcmask 130048
    %s14 = scalar_lea.vmem [#allocation0], 8
    %15 = vst.msk [vmem:[%s14] sm:$0x1] %vm13, %v12
    %vm16 = vcmask 1048560
    %17 = vst.msk [vmem:[#allocation0] sm:$0x1] %vm16, %v12
    %s18 = scalar_lea.vmem %s0, 14
    %v19 = vld [vmem:[%s18] sm:$0x1]
    %s20 = scalar_lea.vmem %s0, 14
    %v21 = vld [vmem:[%s20] sm:$0x1]
    %vm22 = vcmask 31744
    %v23 = vsel %vm22, %v21, %v19
    %24 = vrot.lane.b32.xlu0 %v23, 124
    %v25 = vpop.permute.xlu0 %24
    %vm26 = vcmask 113664
    %s27 = scalar_lea.vmem [#allocation0], 16
    %28 = vst.msk [vmem:[%s27] sm:$0x1] %vm26, %v25
    %vm29 = vcmask 1048544
    %s30 = scalar_lea.vmem [#allocation0], 8
    %31 = vst.msk [vmem:[%s30] sm:$0x1] %vm29, %v25
    %s32 = scalar_lea.vmem %s0, 27
    %v33 = vld [vmem:[%s32] sm:$0x1]
    %s34 = scalar_lea.vmem %s0, 27
    %v35 = vld [vmem:[%s34] sm:$0x1]
    %vm36 = vcmask 48128
    %v37 = vsel %vm36, %v35, %v33
    %38 = vrot.lane.b32.xlu0 %v37, 122
    %v39 = vpop.permute.xlu0 %38
    %vm40 = vcmask 97280
    %s41 = scalar_lea.vmem [#allocation0], 24
    %42 = vst.msk [vmem:[%s41] sm:$0x1] %vm40, %v39
    %vm43 = vcmask 1048528
    %s44 = scalar_lea.vmem [#allocation0], 16
    %45 = vst.msk [vmem:[%s44] sm:$0x1] %vm43, %v39
    %s46 = scalar_lea.vmem %s0, 34
    %v47 = vld [vmem:[%s46] sm:$0x1]
    %s48 = scalar_lea.vmem %s0, 34
    %v49 = vld [vmem:[%s48] sm:$0x1]
    %vm50 = vcmask 64512
    %v51 = vsel %vm50, %v49, %v47
    %52 = vrot.lane.b32.xlu0 %v51, 120
    %v53 = vpop.permute.xlu0 %52
    %vm54 = vcmask 80896
    %s55 = scalar_lea.vmem [#allocation0], 32
    %56 = vst.msk [vmem:[%s55] sm:$0x1] %vm54, %v53
    %vm57 = vcmask 1048512
    %s58 = scalar_lea.vmem [#allocation0], 24
    %59 = vst.msk [vmem:[%s58] sm:$0x1] %vm57, %v53
    %s60 = scalar_lea.vmem %s0, 41
    %v61 = vld [vmem:[%s60] sm:$0x1]
    %s62 = scalar_lea.vmem %s0, 41
    %v63 = vld [vmem:[%s62] sm:$0x1]
    %vm64 = vcmask 80896
    %v65 = vsel %vm64, %v63, %v61
    %66 = vrot.lane.b32.xlu0 %v65, 118
    %v67 = vpop.permute.xlu0 %66
    %vm68 = vcmask 64512
    %s69 = scalar_lea.vmem [#allocation0], 40
    %70 = vst.msk [vmem:[%s69] sm:$0x1] %vm68, %v67
    %vm71 = vcmask 1048496
    %s72 = scalar_lea.vmem [#allocation0], 32
    %73 = vst.msk [vmem:[%s72] sm:$0x1] %vm71, %v67
    %s74 = scalar_lea.vmem %s0, 6
    %v75 = vld [vmem:[%s74] sm:$0x1]
    %76 = vrot.lane.b32.xlu0 %v75, 108
    %v77 = vpop.permute.xlu0 %76
    %vm78 = vcmask 1032032
    %79 = vst.msk [vmem:[#allocation0] sm:$0x1] %vm78, %v77
    %s80 = scalar_lea.vmem %s0, 13
    %v81 = vld [vmem:[%s80] sm:$0x1]
    %82 = vrot.lane.b32.xlu0 %v81, 106
    %v83 = vpop.permute.xlu0 %82
    %vm84 = vcmask 1015632
    %s85 = scalar_lea.vmem [#allocation0], 8
    %86 = vst.msk [vmem:[%s85] sm:$0x1] %vm84, %v83
    %s87 = scalar_lea.vmem %s0, 26
    %v88 = vld [vmem:[%s87] sm:$0x1]
    %89 = vrot.lane.b32.xlu0 %v88, 104
    %v90 = vpop.permute.xlu0 %89
    %vm91 = vcmask 999232
    %s92 = scalar_lea.vmem [#allocation0], 16
    %93 = vst.msk [vmem:[%s92] sm:$0x1] %vm91, %v90
    %s94 = scalar_lea.vmem %s0, 33
    %v95 = vld [vmem:[%s94] sm:$0x1]
    %96 = vrot.lane.b32.xlu0 %v95, 102
    %v97 = vpop.permute.xlu0 %96
    %vm98 = vcmask 982832
    %s99 = scalar_lea.vmem [#allocation0], 24
    %100 = vst.msk [vmem:[%s99] sm:$0x1] %vm98, %v97
    %s101 = scalar_lea.vmem %s0, 40
    %v102 = vld [vmem:[%s101] sm:$0x1]
    %103 = vrot.lane.b32.xlu0 %v102, 100
    %v104 = vpop.permute.xlu0 %103
    %vm105 = vcmask 966432
    %s106 = scalar_lea.vmem [#allocation0], 32
    %107 = vst.msk [vmem:[%s106] sm:$0x1] %vm105, %v104
    %s108 = scalar_lea.vmem %s0, 5
    %v109 = vld [vmem:[%s108] sm:$0x1]
    %110 = vrot.lane.b32.xlu0 %v109, 90
    %v111 = vpop.permute.xlu0 %110
    %vm112 = vcmask 884432
    %113 = vst.msk [vmem:[#allocation0] sm:$0x1] %vm112, %v111
    %s114 = scalar_lea.vmem %s0, 12
    %v115 = vld [vmem:[%s114] sm:$0x1]
    %116 = vrot.lane.b32.xlu0 %v115, 88
    %v117 = vpop.permute.xlu0 %116
    %vm118 = vcmask 868032
    %s119 = scalar_lea.vmem [#allocation0], 8
    %120 = vst.msk [vmem:[%s119] sm:$0x1] %vm118, %v117
    %s121 = scalar_lea.vmem %s0, 25
    %v122 = vld [vmem:[%s121] sm:$0x1]
    %123 = vrot.lane.b32.xlu0 %v122, 86
    %v124 = vpop.permute.xlu0 %123
    %vm125 = vcmask 851632
    %s126 = scalar_lea.vmem [#allocation0], 16
    %127 = vst.msk [vmem:[%s126] sm:$0x1] %vm125, %v124
    %s128 = scalar_lea.vmem %s0, 32
    %v129 = vld [vmem:[%s128] sm:$0x1]
    %130 = vrot.lane.b32.xlu0 %v129, 84
    %v131 = vpop.permute.xlu0 %130
    %vm132 = vcmask 835232
    %s133 = scalar_lea.vmem [#allocation0], 24
    %134 = vst.msk [vmem:[%s133] sm:$0x1] %vm132, %v131
    %s135 = scalar_lea.vmem %s0, 39
    %v136 = vld [vmem:[%s135] sm:$0x1]
    %137 = vrot.lane.b32.xlu0 %v136, 82
    %v138 = vpop.permute.xlu0 %137
    %vm139 = vcmask 818832
    %s140 = scalar_lea.vmem [#allocation0], 32
    %141 = vst.msk [vmem:[%s140] sm:$0x1] %vm139, %v138
    %s142 = scalar_lea.vmem %s0, 4
    %v143 = vld [vmem:[%s142] sm:$0x1]
    %144 = vrot.lane.b32.xlu0 %v143, 72
    %v145 = vpop.permute.xlu0 %144
    %vm146 = vcmask 736832
    %147 = vst.msk [vmem:[#allocation0] sm:$0x1] %vm146, %v145
    %s148 = scalar_lea.vmem %s0, 11
    %v149 = vld [vmem:[%s148] sm:$0x1]
    %150 = vrot.lane.b32.xlu0 %v149, 70
    %v151 = vpop.permute.xlu0 %150
    %vm152 = vcmask 720432
    %s153 = scalar_lea.vmem [#allocation0], 8
    %154 = vst.msk [vmem:[%s153] sm:$0x1] %vm152, %v151
    %s155 = scalar_lea.vmem %s0, 24
    %v156 = vld [vmem:[%s155] sm:$0x1]
    %157 = vrot.lane.b32.xlu0 %v156, 68
    %v158 = vpop.permute.xlu0 %157
    %vm159 = vcmask 704032
    %s160 = scalar_lea.vmem [#allocation0], 16
    %161 = vst.msk [vmem:[%s160] sm:$0x1] %vm159, %v158
    %s162 = scalar_lea.vmem %s0, 31
    %v163 = vld [vmem:[%s162] sm:$0x1]
    %164 = vrot.lane.b32.xlu0 %v163, 66
    %v165 = vpop.permute.xlu0 %164
    %vm166 = vcmask 687632
    %s167 = scalar_lea.vmem [#allocation0], 24
    %168 = vst.msk [vmem:[%s167] sm:$0x1] %vm166, %v165
    %s169 = scalar_lea.vmem %s0, 38
    %v170 = vld [vmem:[%s169] sm:$0x1]
    %171 = vrot.lane.b32.xlu0 %v170, 64
    %v172 = vpop.permute.xlu0 %171
    %vm173 = vcmask 671232
    %s174 = scalar_lea.vmem [#allocation0], 32
    %175 = vst.msk [vmem:[%s174] sm:$0x1] %vm173, %v172
    %s176 = scalar_lea.vmem %s0, 3
    %v177 = vld [vmem:[%s176] sm:$0x1]
    %178 = vrot.lane.b32.xlu0 %v177, 54
    %v179 = vpop.permute.xlu0 %178
    %vm180 = vcmask 589232
    %181 = vst.msk [vmem:[#allocation0] sm:$0x1] %vm180, %v179
    %s182 = scalar_lea.vmem %s0, 10
    %v183 = vld [vmem:[%s182] sm:$0x1]
    %184 = vrot.lane.b32.xlu0 %v183, 52
    %v185 = vpop.permute.xlu0 %184
    %vm186 = vcmask 572832
    %s187 = scalar_lea.vmem [#allocation0], 8
    %188 = vst.msk [vmem:[%s187] sm:$0x1] %vm186, %v185
    %s189 = scalar_lea.vmem %s0, 17
    %v190 = vld [vmem:[%s189] sm:$0x1]
    %191 = vrot.lane.b32.xlu0 %v190, 50
    %v192 = vpop.permute.xlu0 %191
    %vm193 = vcmask 556432
    %s194 = scalar_lea.vmem [#allocation0], 16
    %195 = vst.msk [vmem:[%s194] sm:$0x1] %vm193, %v192
    %s196 = scalar_lea.vmem %s0, 30
    %v197 = vld [vmem:[%s196] sm:$0x1]
    %198 = vrot.lane.b32.xlu0 %v197, 48
    %v199 = vpop.permute.xlu0 %198
    %vm200 = vcmask 540032
    %s201 = scalar_lea.vmem [#allocation0], 24
    %202 = vst.msk [vmem:[%s201] sm:$0x1] %vm200, %v199
    %s203 = scalar_lea.vmem %s0, 37
    %v204 = vld [vmem:[%s203] sm:$0x1]
    %205 = vrot.lane.b32.xlu0 %v204, 46
    %v206 = vpop.permute.xlu0 %205
    %vm207 = vcmask 523632
    %s208 = scalar_lea.vmem [#allocation0], 32
    %209 = vst.msk [vmem:[%s208] sm:$0x1] %vm207, %v206
    %s210 = scalar_lea.vmem %s0, 2
    %v211 = vld [vmem:[%s210] sm:$0x1]
    %212 = vrot.lane.b32.xlu0 %v211, 36
    %v213 = vpop.permute.xlu0 %212
    %vm214 = vcmask 441632
    %215 = vst.msk [vmem:[#allocation0] sm:$0x1] %vm214, %v213
    %s216 = scalar_lea.vmem %s0, 9
    %v217 = vld [vmem:[%s216] sm:$0x1]
    %218 = vrot.lane.b32.xlu0 %v217, 34
    %v219 = vpop.permute.xlu0 %218
    %vm220 = vcmask 425232
    %s221 = scalar_lea.vmem [#allocation0], 8
    %222 = vst.msk [vmem:[%s221] sm:$0x1] %vm220, %v219
    %s223 = scalar_lea.vmem %s0, 16
    %v224 = vld [vmem:[%s223] sm:$0x1]
    %225 = vrot.lane.b32.xlu0 %v224, 32
    %v226 = vpop.permute.xlu0 %225
    %vm227 = vcmask 408832
    %s228 = scalar_lea.vmem [#allocation0], 16
    %229 = vst.msk [vmem:[%s228] sm:$0x1] %vm227, %v226
    %s230 = scalar_lea.vmem %s0, 29
    %v231 = vld [vmem:[%s230] sm:$0x1]
    %232 = vrot.lane.b32.xlu0 %v231, 30
    %v233 = vpop.permute.xlu0 %232
    %vm234 = vcmask 392432
    %s235 = scalar_lea.vmem [#allocation0], 24
    %236 = vst.msk [vmem:[%s235] sm:$0x1] %vm234, %v233
    %s237 = scalar_lea.vmem %s0, 36
    %v238 = vld [vmem:[%s237] sm:$0x1]
    %239 = vrot.lane.b32.xlu0 %v238, 28
    %v240 = vpop.permute.xlu0 %239
    %vm241 = vcmask 376032
    %s242 = scalar_lea.vmem [#allocation0], 32
    %243 = vst.msk [vmem:[%s242] sm:$0x1] %vm241, %v240
    %s244 = scalar_lea.vmem %s0, 1
    %v245 = vld [vmem:[%s244] sm:$0x1]
    %246 = vrot.lane.b32.xlu0 %v245, 18
    %v247 = vpop.permute.xlu0 %246
    %vm248 = vcmask 294032
    %249 = vst.msk [vmem:[#allocation0] sm:$0x1] %vm248, %v247
    %s250 = scalar_lea.vmem %s0, 8
    %v251 = vld [vmem:[%s250] sm:$0x1]
    %252 = vrot.lane.b32.xlu0 %v251, 16
    %v253 = vpop.permute.xlu0 %252
    %vm254 = vcmask 277632
    %s255 = scalar_lea.vmem [#allocation0], 8
    %256 = vst.msk [vmem:[%s255] sm:$0x1] %vm254, %v253
    %s257 = scalar_lea.vmem %s0, 15
    %v258 = vld [vmem:[%s257] sm:$0x1]
    %259 = vrot.lane.b32.xlu0 %v258, 14
    %v260 = vpop.permute.xlu0 %259
    %vm261 = vcmask 261232
    %s262 = scalar_lea.vmem [#allocation0], 16
    %263 = vst.msk [vmem:[%s262] sm:$0x1] %vm261, %v260
    %s264 = scalar_lea.vmem %s0, 28
    %v265 = vld [vmem:[%s264] sm:$0x1]
    %266 = vrot.lane.b32.xlu0 %v265, 12
    %v267 = vpop.permute.xlu0 %266
    %vm268 = vcmask 244832
    %s269 = scalar_lea.vmem [#allocation0], 24
    %270 = vst.msk [vmem:[%s269] sm:$0x1] %vm268, %v267
    %s271 = scalar_lea.vmem %s0, 35
    %v272 = vld [vmem:[%s271] sm:$0x1]
    %273 = vrot.lane.b32.xlu0 %v272, 10
    %v274 = vpop.permute.xlu0 %273
    %vm275 = vcmask 228432
    %s276 = scalar_lea.vmem [#allocation0], 32
    %277 = vst.msk [vmem:[%s276] sm:$0x1] %vm275, %v274
    %s279 = sshll.u32 1, 1
    %s280 = ssub.s32 %s279, 1
    %v282 = vld [vmem:[#allocation0] sm:%s280]
    %s283 = sshll.u32 1, 1
    %s284 = ssub.s32 %s283, 1
    %285 = vst [vmem:[%s1] sm:%s284] %v282
    %s286 = scalar_lea.vmem [#allocation0], 8
    %v287 = vld [vmem:[%s286] sm:%s280]
    %s288 = sshll.u32 1, 1
    %s289 = ssub.s32 %s288, 1
    %s290 = scalar_lea.vmem %s1, 1
    %291 = vst [vmem:[%s290] sm:%s289] %v287
    %s292 = scalar_lea.vmem [#allocation0], 16
    %v293 = vld [vmem:[%s292] sm:%s280]
    %s294 = sshll.u32 1, 1
    %s295 = ssub.s32 %s294, 1
    %s296 = smul.addr 1, 2
    %s297 = scalar_lea.vmem %s1, %s296
    %298 = vst [vmem:[%s297] sm:%s295] %v293
    %s299 = scalar_lea.vmem [#allocation0], 24
    %v300 = vld [vmem:[%s299] sm:%s280]
    %s301 = sshll.u32 1, 1
    %s302 = ssub.s32 %s301, 1
    %s303 = smul.addr 1, 3
    %s304 = scalar_lea.vmem %s1, %s303
    %305 = vst [vmem:[%s304] sm:%s302] %v300
    %s306 = scalar_lea.vmem [#allocation0], 32
    %v307 = vld [vmem:[%s306] sm:%s280]
    %s308 = sshll.u32 1, 1
    %s309 = ssub.s32 %s308, 1
    %s310 = smul.addr 1, 4
    %s311 = scalar_lea.vmem %s1, %s310
    %312 = vst [vmem:[%s311] sm:%s309] %v307
    %s313 = scalar_lea.vmem [#allocation0], 40
    %v314 = vld [vmem:[%s313] sm:%s280]
    %s315 = sshll.u32 1, 1
    %s316 = ssub.s32 %s315, 1
    %s317 = smul.addr 1, 5
    %s318 = scalar_lea.vmem %s1, %s317
    %319 = vst [vmem:[%s318] sm:%s316] %v314

// kernel: dense_block_forward.1
$region0: #{dense_block_forward.1}
  #allocation0 [shape = 'u32[]', space=smem, size = 0x4, offset = 0x4, fixed_abs, tag = 'smem constant byte address 0x4 - core index']
  #allocation1 [shape = 'u32[144,128]{1,0:T(1,128)}', space=vmem, size = 0x12000, scoped, tag = 'internal scratch']
  #allocation2 [shape = 'f32[16,1]{1,0:T(8,128)}', space=vmem, size = 0x2000, scoped, tag = 'scratch operand']
  #allocation3 [shape = 'f32[16,1]{1,0:T(8,128)}', space=vmem, size = 0x2000, scoped, tag = 'scratch operand']
  %s0 = inlined_call_operand.vmem [shape: f32[4,768], index: 0, kind: input, shape index: {}]
  %s1 = inlined_call_operand.vmem [shape: f32[1,768], index: 1, kind: input, shape index: {}]
  %s2 = inlined_call_operand.vmem [shape: f32[72,4], index: 2, kind: input, shape index: {}]
  %s3 = inlined_call_operand.vmem [shape: f32[4,1], index: 3, kind: input, shape index: {}]
  %s4 = inlined_call_operand.vmem [shape: f32[4,1], index: 4, kind: input, shape index: {}]
  %s5 = inlined_call_operand.vmem [shape: f32[72,8], index: 5, kind: input, shape index: {}]
  %s6 = inlined_call_operand.vmem [shape: f32[8,1], index: 6, kind: input, shape index: {}]
  %s7 = inlined_call_operand.vmem [shape: f32[8,1], index: 7, kind: input, shape index: {}]
  %s8 = inlined_call_operand.vmem [shape: f32[72,12], index: 8, kind: input, shape index: {}]
  %s9 = inlined_call_operand.vmem [shape: f32[12,1], index: 9, kind: input, shape index: {}]
  %s10 = inlined_call_operand.vmem [shape: f32[12,1], index: 10, kind: input, shape index: {}]
  %s11 = inlined_call_operand.vmem [shape: f32[16,768], index: 11, kind: output, shape index: {}]
  %s12 = sld [smem:[#allocation0]]
  $region54: #{dense_block_forward.1} parent=0
    _
  %s14 = ssub.s32 1, %s12
  %s15 = scalar_select 0, %s14, %s12
  // Predicated region
  $region2: #{dense_block_forward.1} parent=0 // pred_check
    _
  $region3: #{dense_block_forward.1} parent=0 // pred_check_branch
    %17 = sbr.rel (0) target = $region5
  $region4: #{dense_block_forward.1} parent=0 // pred_region
    _
  $region5: #{dense_block_forward.1} parent=0 // pred_fallthru
    _
  // Predicated region
  $region6: #{dense_block_forward.1} parent=0 // pred_check
    _
  $region7: #{dense_block_forward.1} parent=0 // pred_check_branch
    %19 = sbr.rel (0) target = $region9
  $region8: #{dense_block_forward.1} parent=0 // pred_region
    _
  $region9: #{dense_block_forward.1} parent=0 // pred_fallthru
    _
  // Predicated region
  $region10: #{dense_block_forward.1} parent=0 // pred_check
    _
  $region11: #{dense_block_forward.1} parent=0 // pred_check_branch
    %21 = sbr.rel (0) target = $region13
  $region12: #{dense_block_forward.1} parent=0 // pred_region
    _
  $region13: #{dense_block_forward.1} parent=0 // pred_fallthru
    _
  // Predicated region
  $region14: #{dense_block_forward.1} parent=0 // pred_check
    _
  $region15: #{dense_block_forward.1} parent=0 // pred_check_branch
    %23 = sbr.rel (0) target = $region17
  $region16: #{dense_block_forward.1} parent=0 // pred_region
    _
  $region17: #{dense_block_forward.1} parent=0 // pred_fallthru
    _
  // Predicated region
  $region18: #{dense_block_forward.1} parent=0 // pred_check
    _
  $region19: #{dense_block_forward.1} parent=0 // pred_check_branch
    %25 = sbr.rel (0) target = $region21
  $region20: #{dense_block_forward.1} parent=0 // pred_region
    _
  $region21: #{dense_block_forward.1} parent=0 // pred_fallthru
    _
  // Predicated region
  $region22: #{dense_block_forward.1} parent=0 // pred_check
    _
  $region23: #{dense_block_forward.1} parent=0 // pred_check_branch
    %27 = sbr.rel (0) target = $region25
  $region24: #{dense_block_forward.1} parent=0 // pred_region
    _
  $region25: #{dense_block_forward.1} parent=0 // pred_fallthru
    _
  // Predicated region
  $region26: #{dense_block_forward.1} parent=0 // pred_check
    _
  $region27: #{dense_block_forward.1} parent=0 // pred_check_branch
    %29 = sbr.rel (0) target = $region29
  $region28: #{dense_block_forward.1} parent=0 // pred_region
    _
  $region29: #{dense_block_forward.1} parent=0 // pred_fallthru
    _
  // Predicated region
  $region30: #{dense_block_forward.1} parent=0 // pred_check
    _
  $region31: #{dense_block_forward.1} parent=0 // pred_check_branch
    %31 = sbr.rel (0) target = $region33
  $region32: #{dense_block_forward.1} parent=0 // pred_region
    _
  $region33: #{dense_block_forward.1} parent=0 // pred_fallthru
    _
  // Predicated region
  $region34: #{dense_block_forward.1} parent=0 // pred_check
    _
  $region35: #{dense_block_forward.1} parent=0 // pred_check_branch
    %33 = sbr.rel (0) target = $region37
  $region36: #{dense_block_forward.1} parent=0 // pred_region
    _
  $region37: #{dense_block_forward.1} parent=0 // pred_fallthru
    _
  // Predicated region
  $region38: #{dense_block_forward.1} parent=0 // pred_check
    _
  $region39: #{dense_block_forward.1} parent=0 // pred_check_branch
    %35 = sbr.rel (0) target = $region41
  $region40: #{dense_block_forward.1} parent=0 // pred_region
    _
  $region41: #{dense_block_forward.1} parent=0 // pred_fallthru
    _
  // Predicated region
  $region42: #{dense_block_forward.1} parent=0 // pred_check
    _
  $region43: #{dense_block_forward.1} parent=0 // pred_check_branch
    %37 = sbr.rel (0) target = $region45
  $region44: #{dense_block_forward.1} parent=0 // pred_region
    _
  $region45: #{dense_block_forward.1} parent=0 // pred_fallthru
    _
  %v38 = vld [vmem:[%s1] sm:$0x3f]
  %v39 = vld [vmem:[%s0] sm:$0xff]
  %v40 = vld [vmem:[%s0 + $0x8] sm:$0xff]
  %v41 = vld [vmem:[%s0 + $0x10] sm:$0xff]
  %v45 = vcombine.high %v39, %v39
  %v46 = vcombine.high %v40, %v40
  %v47 = vcombine.high %v41, %v41
  %51 = vst [vmem:[%s11] sm:$0xf] %v39
  %52 = vst [vmem:[%s11 + $0x8] sm:$0xf] %v45
  %53 = vst [vmem:[%s11 + $0x10] sm:$0xf] %v40
  %54 = vst [vmem:[%s11 + $0x18] sm:$0xf] %v46
  %55 = vst [vmem:[%s11 + $0x20] sm:$0xf] %v41
  %56 = vst [vmem:[%s11 + $0x28] sm:$0xf] %v47
  %vm57 = vcmask 1043456
  %v58 = vsel %vm57, %v39, 0.0
  %v59 = vsel %vm57, %v45, 0.0
  %v60 = vadd.f32 %v58, %v59
  %v61 = vsel %vm57, %v40, 0.0
  %v62 = vadd.f32 %v60, %v61
  %v63 = vsel %vm57, %v46, 0.0
  %v64 = vadd.f32 %v62, %v63
  %v65 = vsel %vm57, %v41, 0.0
  %v66 = vadd.f32 %v64, %v65
  %v67 = vsel %vm57, %v47, 0.0
  %v68 = vadd.f32 %v66, %v67
  %69 = vadd.xlane.f32.xlu0 %v68
  %v70 = vpop.xlane.xlu0 %69
  %vm71 = vcmask 3072
  %72 = vst.msk [vmem:[#allocation2] sm:$0xf] %vm71, %v70
  %v73 = vmul.f32 %v39, %v39
  %v74 = vmul.f32 %v40, %v40
  %v75 = vmul.f32 %v41, %v41
  %v79 = vcombine.high %v73, %v73
  %v80 = vcombine.high %v74, %v74
  %v81 = vcombine.high %v75, %v75
  %v85 = vsel %vm57, %v73, 0.0
  %v86 = vsel %vm57, %v79, 0.0
  %v87 = vadd.f32 %v85, %v86
  %v88 = vsel %vm57, %v74, 0.0
  %v89 = vadd.f32 %v87, %v88
  %v90 = vsel %vm57, %v80, 0.0
  %v91 = vadd.f32 %v89, %v90
  %v92 = vsel %vm57, %v75, 0.0
  %v93 = vadd.f32 %v91, %v92
  %v94 = vsel %vm57, %v81, 0.0
  %v95 = vadd.f32 %v93, %v94
  %96 = vadd.xlane.f32.xlu0 %v95
  %v97 = vpop.xlane.xlu0 %96
  %98 = vst.msk [vmem:[#allocation3] sm:$0xf] %vm71, %v97
  %v99 = vld [vmem:[%s11] sm:$0xf]
  %v100 = vld [vmem:[%s11 + $0x8] sm:$0xf]
  %v101 = vld [vmem:[%s11 + $0x10] sm:$0xf]
  %v102 = vld [vmem:[%s11 + $0x18] sm:$0xf]
  %v103 = vld [vmem:[%s11 + $0x20] sm:$0xf]
  %v104 = vld [vmem:[%s11 + $0x28] sm:$0xf]
  %v105 = vld [vmem:[#allocation2] sm:$0xf]
  %v106 = vmul.f32 %v105, 0.001953125
  %v107 = vld [vmem:[#allocation3] sm:$0xf]
  %v108 = vmul.f32 %v107, 0.001953125
  %v109 = vmul.f32 %v106, %v106
  %v110 = vsub.f32 %v108, %v109
  %v111 = vld [vmem:[%s3] sm:$0xf]
  %v112 = vadd.f32 %v110, 1e-05
  %v113 = vrsqrt.pop %v112
  %v114 = vmul.f32 %v111, %v113
  %v115 = vld [vmem:[%s4] sm:$0xf]
  %v116 = vmul.f32 %v106, %v114
  %v117 = vsub.f32 %v115, %v116
  %119 = vset.pattern.permute.xlu0 0
  %120 = vperm.xlu0 %119, %v114
  %v121 = vpop.permute.xlu0 %120
  %v123 = vmul.f32 %v99, %v121
  %v124 = vmul.f32 %v100, %v121
  %v125 = vmul.f32 %v101, %v121
  %v126 = vmul.f32 %v102, %v121
  %v127 = vmul.f32 %v103, %v121
  %v128 = vmul.f32 %v104, %v121
  %130 = vset.pattern.permute.xlu0 0
  %131 = vperm.xlu0 %130, %v117
  %v132 = vpop.permute.xlu0 %131
  %v134 = vadd.f32 %v123, %v132
  %v135 = vadd.f32 %v124, %v132
  %v136 = vadd.f32 %v125, %v132
  %v137 = vadd.f32 %v126, %v132
  %v138 = vadd.f32 %v127, %v132
  %v139 = vadd.f32 %v128, %v132
  %v140 = vmax.f32 %v134, 0.0
  %v141 = vmax.f32 %v135, 0.0
  %v142 = vmax.f32 %v136, 0.0
  %v143 = vmax.f32 %v137, 0.0
  %v144 = vmax.f32 %v138, 0.0
  %v145 = vmax.f32 %v139, 0.0
  %v147 = vlaneseq
  %v148 = vshrl.u32 %v147, 7
  %v149 = vsub.s32 0, %v148
  %v150 = vrot.slane %v38, %v149
  %v151 = vlaneseq
  %v152 = vshrl.u32 %v151, 7
  %v153 = vsub.s32 1, %v152
  %v154 = vrot.slane %v38, %v153
  %v155 = vlaneseq
  %v156 = vshrl.u32 %v155, 7
  %v157 = vsub.s32 2, %v156
  %v158 = vrot.slane %v38, %v157
  %v159 = vlaneseq
  %v160 = vshrl.u32 %v159, 7
  %v161 = vsub.s32 3, %v160
  %v162 = vrot.slane %v38, %v161
  %v163 = vlaneseq
  %v164 = vshrl.u32 %v163, 7
  %v165 = vsub.s32 4, %v164
  %v166 = vrot.slane %v38, %v165
  %v167 = vlaneseq
  %v168 = vshrl.u32 %v167, 7
  %v169 = vsub.s32 5, %v168
  %v170 = vrot.slane %v38, %v169
  %v177 = vmul.f32 %v140, %v150
  %v178 = vmul.f32 %v141, %v154
  %v179 = vmul.f32 %v142, %v158
  %v180 = vmul.f32 %v143, %v162
  %v181 = vmul.f32 %v144, %v166
  %v182 = vmul.f32 %v145, %v170
  %v183 = vld [vmem:[%s2] sm:$0xff]
  %v184 = vld [vmem:[%s2 + $0x8] sm:$0xff]
  %v185 = vld [vmem:[%s2 + $0x10] sm:$0xff]
  %v186 = vld [vmem:[%s2 + $0x18] sm:$0xff]
  %v187 = vld [vmem:[%s2 + $0x20] sm:$0xff]
  %v188 = vld [vmem:[%s2 + $0x28] sm:$0xff]
  %v189 = vld [vmem:[%s2 + $0x30] sm:$0xff]
  %v190 = vld [vmem:[%s2 + $0x38] sm:$0xff]
  %v191 = vld [vmem:[%s2 + $0x40] sm:$0xff]
  %vm192 = vcmask 31744
  %v194 = vsel %vm192, %v183, 0
  %v197 = vsel %vm192, %v184, 0
  %v200 = vsel %vm192, %v185, 0
  %v203 = vsel %vm192, %v186, 0
  %v206 = vsel %vm192, %v187, 0
  %v209 = vsel %vm192, %v188, 0
  %v212 = vsel %vm192, %v189, 0
  %v215 = vsel %vm192, %v190, 0
  %v218 = vsel %vm192, %v191, 0
  %v221 = vsel %vm57, %v177, 0
  %v224 = vsel %vm57, %v178, 0
  %v227 = vsel %vm57, %v179, 0
  %v230 = vsel %vm57, %v180, 0
  %v233 = vsel %vm57, %v181, 0
  %v236 = vsel %vm57, %v182, 0
  %238 = vmatprep.subr.mxu0 0.0
  %239 = vmatpush1.msra.mxu0 0.0
  %240 = vmatprep.subr.mxu0 0.0
  %241 = vmatpush1.msra.mxu0 0.0
  %242 = vmatprep.subr.mxu0 0.0
  %243 = vmatpush1.msra.mxu0 0.0
  %244 = vmatprep.subr.mxu0 0.0
  %245 = vmatpush1.msra.mxu0 0.0
  %246 = vmatprep.subr.mxu0 0.0
  %247 = vmatpush1.msra.mxu0 0.0
  %248 = vmatprep.subr.mxu0 0.0
  %249 = vmatpush1.msra.mxu0 0.0
  %250 = vmatprep.subr.mxu0 0.0
  %251 = vmatpush1.msra.mxu0 0.0
  %252 = vmatprep.subr.mxu0 0.0
  %253 = vmatpush1.msra.mxu0 0.0
  %254 = vmatprep.subr.mxu0 0.0
  %255 = vmatpush1.msra.mxu0 0.0
  %256 = vmatprep.subr.mxu0 0.0
  %257 = vmatpush1.msra.mxu0 0.0
  %258 = vmatprep.subr.mxu0 0.0
  %259 = vmatpush1.msra.mxu0 0.0
  %260 = vmatprep.subr.mxu0 0.0
  %261 = vmatpush1.msra.mxu0 0.0
  %262 = vmatprep.subr.mxu0 0.0
  %263 = vmatpush1.msra.mxu0 0.0
  %264 = vmatprep.subr.mxu0 0.0
  %265 = vmatpush1.msra.mxu0 0.0
  %266 = vmatprep.subr.mxu0 0.0
  %267 = vmatpush1.msra.mxu0 0.0
  %268 = vmatprep.subr.mxu0 %v224
  %269 = vmatpush1.msra.mxu0 %v221
  %270 = vmatprep.subr.mxu0 0.0
  %271 = vmatpush2.msra.mxu0 0.0
  %272 = vmatprep.subr.mxu0 0.0
  %273 = vmatpush2.msra.mxu0 0.0
  %274 = vmatprep.subr.mxu0 0.0
  %275 = vmatpush2.msra.mxu0 0.0
  %276 = vmatprep.subr.mxu0 0.0
  %277 = vmatpush2.msra.mxu0 0.0
  %278 = vmatprep.subr.mxu0 0.0
  %279 = vmatpush2.msra.mxu0 0.0
  %280 = vmatprep.subr.mxu0 0.0
  %281 = vmatpush2.msra.mxu0 0.0
  %282 = vmatprep.subr.mxu0 0.0
  %283 = vmatpush2.msra.mxu0 0.0
  %284 = vmatprep.subr.mxu0 0.0
  %285 = vmatpush2.msra.mxu0 0.0
  %286 = vmatprep.subr.mxu0 0.0
  %287 = vmatpush2.msra.mxu0 0.0
  %288 = vmatprep.subr.mxu0 0.0
  %289 = vmatpush2.msra.mxu0 0.0
  %290 = vmatprep.subr.mxu0 0.0
  %291 = vmatpush2.msra.mxu0 0.0
  %292 = vmatprep.subr.mxu0 0.0
  %293 = vmatpush2.msra.mxu0 0.0
  %294 = vmatprep.subr.mxu0 0.0
  %295 = vmatpush2.msra.mxu0 0.0
  %296 = vmatprep.subr.mxu0 0.0
  %297 = vmatpush2.msra.mxu0 0.0
  %298 = vmatprep.subr.mxu0 0.0
  %299 = vmatpush2.msra.mxu0 0.0
  %300 = vmatprep.subr.mxu0 0.0
  %301 = vmatpush2.msra.mxu0 0.0
  %302 = vmatprep.mubr.f32.mxu0 0.0
  %303 = vmatmul.mubr.f32.gmra.mxu0 %v194
  %v304 = vpop.f32.mrf.mxu0
  %v305 = vadd.f32 0.0, %v304
  %v306 = vpop.f32.mrf.mxu0
  %v307 = vadd.f32 0.0, %v306
  %308 = vmatprep.mubr.f32.mxu0 0.0
  %309 = vmatmul.mubr.f32.gmra.mxu0 %v197
  %v310 = vpop.f32.mrf.mxu0
  %v311 = vadd.f32 0.0, %v310
  %v312 = vpop.f32.mrf.mxu0
  %v313 = vadd.f32 0.0, %v312
  %314 = vmatprep.mubr.f32.mxu0 0.0
  %315 = vmatmul.mubr.f32.gmra.mxu0 %v200
  %v316 = vpop.f32.mrf.mxu0
  %v317 = vadd.f32 0.0, %v316
  %v318 = vpop.f32.mrf.mxu0
  %v319 = vadd.f32 0.0, %v318
  %320 = vmatprep.mubr.f32.mxu0 0.0
  %321 = vmatmul.mubr.f32.gmra.mxu0 %v203
  %v322 = vpop.f32.mrf.mxu0
  %v323 = vadd.f32 0.0, %v322
  %v324 = vpop.f32.mrf.mxu0
  %v325 = vadd.f32 0.0, %v324
  %326 = vmatprep.mubr.f32.mxu0 0.0
  %327 = vmatmul.mubr.f32.gmra.mxu0 %v206
  %v328 = vpop.f32.mrf.mxu0
  %v329 = vadd.f32 0.0, %v328
  %v330 = vpop.f32.mrf.mxu0
  %v331 = vadd.f32 0.0, %v330
  %332 = vmatprep.mubr.f32.mxu0 0.0
  %333 = vmatmul.mubr.f32.gmra.mxu0 %v209
  %v334 = vpop.f32.mrf.mxu0
  %v335 = vadd.f32 0.0, %v334
  %v336 = vpop.f32.mrf.mxu0
  %v337 = vadd.f32 0.0, %v336
  %338 = vmatprep.mubr.f32.mxu0 0.0
  %339 = vmatmul.mubr.f32.gmra.mxu0 %v212
  %v340 = vpop.f32.mrf.mxu0
  %v341 = vadd.f32 0.0, %v340
  %v342 = vpop.f32.mrf.mxu0
  %v343 = vadd.f32 0.0, %v342
  %344 = vmatprep.mubr.f32.mxu0 0.0
  %345 = vmatmul.mubr.f32.gmra.mxu0 %v215
  %v346 = vpop.f32.mrf.mxu0
  %v347 = vadd.f32 0.0, %v346
  %v348 = vpop.f32.mrf.mxu0
  %v349 = vadd.f32 0.0, %v348
  %350 = vmatprep.mubr.f32.mxu0 0.0
  %351 = vmatmul.mubr.f32.gmra.mxu0 %v218
  %v352 = vpop.f32.mrf.mxu0
  %v353 = vadd.f32 0.0, %v352
  %v354 = vpop.f32.mrf.mxu0
  %v355 = vadd.f32 0.0, %v354
  %356 = vdwg.mxu0
  %357 = vmatprep.subr.mxu0 0.0
  %358 = vmatpush1.msra.mxu0 0.0
  %359 = vmatprep.subr.mxu0 0.0
  %360 = vmatpush1.msra.mxu0 0.0
  %361 = vmatprep.subr.mxu0 0.0
  %362 = vmatpush1.msra.mxu0 0.0
  %363 = vmatprep.subr.mxu0 0.0
  %364 = vmatpush1.msra.mxu0 0.0
  %365 = vmatprep.subr.mxu0 0.0
  %366 = vmatpush1.msra.mxu0 0.0
  %367 = vmatprep.subr.mxu0 0.0
  %368 = vmatpush1.msra.mxu0 0.0
  %369 = vmatprep.subr.mxu0 0.0
  %370 = vmatpush1.msra.mxu0 0.0
  %371 = vmatprep.subr.mxu0 0.0
  %372 = vmatpush1.msra.mxu0 0.0
  %373 = vmatprep.subr.mxu0 0.0
  %374 = vmatpush1.msra.mxu0 0.0
  %375 = vmatprep.subr.mxu0 0.0
  %376 = vmatpush1.msra.mxu0 0.0
  %377 = vmatprep.subr.mxu0 0.0
  %378 = vmatpush1.msra.mxu0 0.0
  %379 = vmatprep.subr.mxu0 0.0
  %380 = vmatpush1.msra.mxu0 0.0
  %381 = vmatprep.subr.mxu0 0.0
  %382 = vmatpush1.msra.mxu0 0.0
  %383 = vmatprep.subr.mxu0 0.0
  %384 = vmatpush1.msra.mxu0 0.0
  %385 = vmatprep.subr.mxu0 0.0
  %386 = vmatpush1.msra.mxu0 0.0
  %387 = vmatprep.subr.mxu0 %v230
  %388 = vmatpush1.msra.mxu0 %v227
  %389 = vmatprep.subr.mxu0 0.0
  %390 = vmatpush2.msra.mxu0 0.0
  %391 = vmatprep.subr.mxu0 0.0
  %392 = vmatpush2.msra.mxu0 0.0
  %393 = vmatprep.subr.mxu0 0.0
  %394 = vmatpush2.msra.mxu0 0.0
  %395 = vmatprep.subr.mxu0 0.0
  %396 = vmatpush2.msra.mxu0 0.0
  %397 = vmatprep.subr.mxu0 0.0
  %398 = vmatpush2.msra.mxu0 0.0
  %399 = vmatprep.subr.mxu0 0.0
  %400 = vmatpush2.msra.mxu0 0.0
  %401 = vmatprep.subr.mxu0 0.0
  %402 = vmatpush2.msra.mxu0 0.0
  %403 = vmatprep.subr.mxu0 0.0
  %404 = vmatpush2.msra.mxu0 0.0
  %405 = vmatprep.subr.mxu0 0.0
  %406 = vmatpush2.msra.mxu0 0.0
  %407 = vmatprep.subr.mxu0 0.0
  %408 = vmatpush2.msra.mxu0 0.0
  %409 = vmatprep.subr.mxu0 0.0
  %410 = vmatpush2.msra.mxu0 0.0
  %411 = vmatprep.subr.mxu0 0.0
  %412 = vmatpush2.msra.mxu0 0.0
  %413 = vmatprep.subr.mxu0 0.0
  %414 = vmatpush2.msra.mxu0 0.0
  %415 = vmatprep.subr.mxu0 0.0
  %416 = vmatpush2.msra.mxu0 0.0
  %417 = vmatprep.subr.mxu0 0.0
  %418 = vmatpush2.msra.mxu0 0.0
  %419 = vmatprep.subr.mxu0 0.0
  %420 = vmatpush2.msra.mxu0 0.0
  %421 = vmatprep.mubr.f32.mxu0 0.0
  %422 = vmatmul.mubr.f32.gmra.mxu0 %v194
  %v423 = vpop.f32.mrf.mxu0
  %v424 = vadd.f32 0.0, %v423
  %v425 = vpop.f32.mrf.mxu0
  %v426 = vadd.f32 0.0, %v425
  %427 = vmatprep.mubr.f32.mxu0 0.0
  %428 = vmatmul.mubr.f32.gmra.mxu0 %v197
  %v429 = vpop.f32.mrf.mxu0
  %v430 = vadd.f32 0.0, %v429
  %v431 = vpop.f32.mrf.mxu0
  %v432 = vadd.f32 0.0, %v431
  %433 = vmatprep.mubr.f32.mxu0 0.0
  %434 = vmatmul.mubr.f32.gmra.mxu0 %v200
  %v435 = vpop.f32.mrf.mxu0
  %v436 = vadd.f32 0.0, %v435
  %v437 = vpop.f32.mrf.mxu0
  %v438 = vadd.f32 0.0, %v437
  %439 = vmatprep.mubr.f32.mxu0 0.0
  %440 = vmatmul.mubr.f32.gmra.mxu0 %v203
  %v441 = vpop.f32.mrf.mxu0
  %v442 = vadd.f32 0.0, %v441
  %v443 = vpop.f32.mrf.mxu0
  %v444 = vadd.f32 0.0, %v443
  %445 = vmatprep.mubr.f32.mxu0 0.0
  %446 = vmatmul.mubr.f32.gmra.mxu0 %v206
  %v447 = vpop.f32.mrf.mxu0
  %v448 = vadd.f32 0.0, %v447
  %v449 = vpop.f32.mrf.mxu0
  %v450 = vadd.f32 0.0, %v449
  %451 = vmatprep.mubr.f32.mxu0 0.0
  %452 = vmatmul.mubr.f32.gmra.mxu0 %v209
  %v453 = vpop.f32.mrf.mxu0
  %v454 = vadd.f32 0.0, %v453
  %v455 = vpop.f32.mrf.mxu0
  %v456 = vadd.f32 0.0, %v455
  %457 = vmatprep.mubr.f32.mxu0 0.0
  %458 = vmatmul.mubr.f32.gmra.mxu0 %v212
  %v459 = vpop.f32.mrf.mxu0
  %v460 = vadd.f32 0.0, %v459
  %v461 = vpop.f32.mrf.mxu0
  %v462 = vadd.f32 0.0, %v461
  %463 = vmatprep.mubr.f32.mxu0 0.0
  %464 = vmatmul.mubr.f32.gmra.mxu0 %v215
  %v465 = vpop.f32.mrf.mxu0
  %v466 = vadd.f32 0.0, %v465
  %v467 = vpop.f32.mrf.mxu0
  %v468 = vadd.f32 0.0, %v467
  %469 = vmatprep.mubr.f32.mxu0 0.0
  %470 = vmatmul.mubr.f32.gmra.mxu0 %v218
  %v471 = vpop.f32.mrf.mxu0
  %v472 = vadd.f32 0.0, %v471
  %v473 = vpop.f32.mrf.mxu0
  %v474 = vadd.f32 0.0, %v473
  %475 = vdwg.mxu0
  %476 = vmatprep.subr.mxu0 0.0
  %477 = vmatpush1.msra.mxu0 0.0
  %478 = vmatprep.subr.mxu0 0.0
  %479 = vmatpush1.msra.mxu0 0.0
  %480 = vmatprep.subr.mxu0 0.0
  %481 = vmatpush1.msra.mxu0 0.0
  %482 = vmatprep.subr.mxu0 0.0
  %483 = vmatpush1.msra.mxu0 0.0
  %484 = vmatprep.subr.mxu0 0.0
  %485 = vmatpush1.msra.mxu0 0.0
  %486 = vmatprep.subr.mxu0 0.0
  %487 = vmatpush1.msra.mxu0 0.0
  %488 = vmatprep.subr.mxu0 0.0
  %489 = vmatpush1.msra.mxu0 0.0
  %490 = vmatprep.subr.mxu0 0.0
  %491 = vmatpush1.msra.mxu0 0.0
  %492 = vmatprep.subr.mxu0 0.0
  %493 = vmatpush1.msra.mxu0 0.0
  %494 = vmatprep.subr.mxu0 0.0
  %495 = vmatpush1.msra.mxu0 0.0
  %496 = vmatprep.subr.mxu0 0.0
  %497 = vmatpush1.msra.mxu0 0.0
  %498 = vmatprep.subr.mxu0 0.0
  %499 = vmatpush1.msra.mxu0 0.0
  %500 = vmatprep.subr.mxu0 0.0
  %501 = vmatpush1.msra.mxu0 0.0
  %502 = vmatprep.subr.mxu0 0.0
  %503 = vmatpush1.msra.mxu0 0.0
  %504 = vmatprep.subr.mxu0 0.0
  %505 = vmatpush1.msra.mxu0 0.0
  %506 = vmatprep.subr.mxu0 %v236
  %507 = vmatpush1.msra.mxu0 %v233
  %508 = vmatprep.subr.mxu0 0.0
  %509 = vmatpush2.msra.mxu0 0.0
  %510 = vmatprep.subr.mxu0 0.0
  %511 = vmatpush2.msra.mxu0 0.0
  %512 = vmatprep.subr.mxu0 0.0
  %513 = vmatpush2.msra.mxu0 0.0
  %514 = vmatprep.subr.mxu0 0.0
  %515 = vmatpush2.msra.mxu0 0.0
  %516 = vmatprep.subr.mxu0 0.0
  %517 = vmatpush2.msra.mxu0 0.0
  %518 = vmatprep.subr.mxu0 0.0
  %519 = vmatpush2.msra.mxu0 0.0
  %520 = vmatprep.subr.mxu0 0.0
  %521 = vmatpush2.msra.mxu0 0.0
  %522 = vmatprep.subr.mxu0 0.0
  %523 = vmatpush2.msra.mxu0 0.0
  %524 = vmatprep.subr.mxu0 0.0
  %525 = vmatpush2.msra.mxu0 0.0
  %526 = vmatprep.subr.mxu0 0.0
  %527 = vmatpush2.msra.mxu0 0.0
  %528 = vmatprep.subr.mxu0 0.0
  %529 = vmatpush2.msra.mxu0 0.0
  %530 = vmatprep.subr.mxu0 0.0
  %531 = vmatpush2.msra.mxu0 0.0
  %532 = vmatprep.subr.mxu0 0.0
  %533 = vmatpush2.msra.mxu0 0.0
  %534 = vmatprep.subr.mxu0 0.0
  %535 = vmatpush2.msra.mxu0 0.0
  %536 = vmatprep.subr.mxu0 0.0
  %537 = vmatpush2.msra.mxu0 0.0
  %538 = vmatprep.subr.mxu0 0.0
  %539 = vmatpush2.msra.mxu0 0.0
  %540 = vmatprep.mubr.f32.mxu0 0.0
  %541 = vmatmul.mubr.f32.gmra.mxu0 %v194
  %v542 = vpop.f32.mrf.mxu0
  %v543 = vadd.f32 0.0, %v542
  %v544 = vpop.f32.mrf.mxu0
  %v545 = vadd.f32 0.0, %v544
  %546 = vmatprep.mubr.f32.mxu0 0.0
  %547 = vmatmul.mubr.f32.gmra.mxu0 %v197
  %v548 = vpop.f32.mrf.mxu0
  %v549 = vadd.f32 0.0, %v548
  %v550 = vpop.f32.mrf.mxu0
  %v551 = vadd.f32 0.0, %v550
  %552 = vmatprep.mubr.f32.mxu0 0.0
  %553 = vmatmul.mubr.f32.gmra.mxu0 %v200
  %v554 = vpop.f32.mrf.mxu0
  %v555 = vadd.f32 0.0, %v554
  %v556 = vpop.f32.mrf.mxu0
  %v557 = vadd.f32 0.0, %v556
  %558 = vmatprep.mubr.f32.mxu0 0.0
  %559 = vmatmul.mubr.f32.gmra.mxu0 %v203
  %v560 = vpop.f32.mrf.mxu0
  %v561 = vadd.f32 0.0, %v560
  %v562 = vpop.f32.mrf.mxu0
  %v563 = vadd.f32 0.0, %v562
  %564 = vmatprep.mubr.f32.mxu0 0.0
  %565 = vmatmul.mubr.f32.gmra.mxu0 %v206
  %v566 = vpop.f32.mrf.mxu0
  %v567 = vadd.f32 0.0, %v566
  %v568 = vpop.f32.mrf.mxu0
  %v569 = vadd.f32 0.0, %v568
  %570 = vmatprep.mubr.f32.mxu0 0.0
  %571 = vmatmul.mubr.f32.gmra.mxu0 %v209
  %v572 = vpop.f32.mrf.mxu0
  %v573 = vadd.f32 0.0, %v572
  %v574 = vpop.f32.mrf.mxu0
  %v575 = vadd.f32 0.0, %v574
  %576 = vmatprep.mubr.f32.mxu0 0.0
  %577 = vmatmul.mubr.f32.gmra.mxu0 %v212
  %v578 = vpop.f32.mrf.mxu0
  %v579 = vadd.f32 0.0, %v578
  %v580 = vpop.f32.mrf.mxu0
  %v581 = vadd.f32 0.0, %v580
  %582 = vmatprep.mubr.f32.mxu0 0.0
  %583 = vmatmul.mubr.f32.gmra.mxu0 %v215
  %v584 = vpop.f32.mrf.mxu0
  %v585 = vadd.f32 0.0, %v584
  %v586 = vpop.f32.mrf.mxu0
  %v587 = vadd.f32 0.0, %v586
  %588 = vmatprep.mubr.f32.mxu0 0.0
  %589 = vmatmul.mubr.f32.gmra.mxu0 %v218
  %v590 = vpop.f32.mrf.mxu0
  %v591 = vadd.f32 0.0, %v590
  %v592 = vpop.f32.mrf.mxu0
  %v593 = vadd.f32 0.0, %v592
  %594 = vdwg.mxu0
  %595 = vrot.lane.b32.xlu0 %v305, 19
  %v596 = vpop.permute.xlu0 %595
  %597 = vrot.lane.b32.xlu0 %v307, 19
  %v598 = vpop.permute.xlu0 %597
  %599 = vrot.lane.b32.xlu0 %v424, 19
  %v600 = vpop.permute.xlu0 %599
  %601 = vrot.lane.b32.xlu0 %v426, 19
  %v602 = vpop.permute.xlu0 %601
  %603 = vrot.lane.b32.xlu0 %v543, 19
  %v604 = vpop.permute.xlu0 %603
  %605 = vrot.lane.b32.xlu0 %v545, 19
  %v606 = vpop.permute.xlu0 %605
  %v607 = vlaneseq
  %v608 = vand.u32 %v607, 127
  %vm609 = vcmp.lt.s32.totalorder %v608, 19
  %v610 = vsel %vm609, %v604, %v606
  %v611 = vsel %vm609, %v602, %v604
  %v612 = vsel %vm609, %v600, %v602
  %v613 = vsel %vm609, %v598, %v600
  %v614 = vsel %vm609, %v596, %v598
  %v615 = vsel %vm609, %v606, %v596
  %616 = vrot.lane.b32.xlu0 %v311, 18
  %v617 = vpop.permute.xlu0 %616
  %618 = vrot.lane.b32.xlu0 %v313, 18
  %v619 = vpop.permute.xlu0 %618
  %620 = vrot.lane.b32.xlu0 %v430, 18
  %v621 = vpop.permute.xlu0 %620
  %622 = vrot.lane.b32.xlu0 %v432, 18
  %v623 = vpop.permute.xlu0 %622
  %624 = vrot.lane.b32.xlu0 %v549, 18
  %v625 = vpop.permute.xlu0 %624
  %626 = vrot.lane.b32.xlu0 %v551, 18
  %v627 = vpop.permute.xlu0 %626
  %vm628 = vcmp.lt.s32.totalorder %v608, 18
  %v629 = vsel %vm628, %v625, %v627
  %v630 = vsel %vm628, %v623, %v625
  %v631 = vsel %vm628, %v621, %v623
  %v632 = vsel %vm628, %v619, %v621
  %v633 = vsel %vm628, %v617, %v619
  %v634 = vsel %vm628, %v627, %v617
  %v635 = vadd.f32 %v615, %v634
  %v636 = vadd.f32 %v614, %v633
  %v637 = vadd.f32 %v613, %v632
  %v638 = vadd.f32 %v612, %v631
  %v639 = vadd.f32 %v611, %v630
  %v640 = vadd.f32 %v610, %v629
  %641 = vrot.lane.b32.xlu0 %v317, 17
  %v642 = vpop.permute.xlu0 %641
  %643 = vrot.lane.b32.xlu0 %v319, 17
  %v644 = vpop.permute.xlu0 %643
  %645 = vrot.lane.b32.xlu0 %v436, 17
  %v646 = vpop.permute.xlu0 %645
  %647 = vrot.lane.b32.xlu0 %v438, 17
  %v648 = vpop.permute.xlu0 %647
  %649 = vrot.lane.b32.xlu0 %v555, 17
  %v650 = vpop.permute.xlu0 %649
  %651 = vrot.lane.b32.xlu0 %v557, 17
  %v652 = vpop.permute.xlu0 %651
  %vm653 = vcmp.lt.s32.totalorder %v608, 17
  %v654 = vsel %vm653, %v650, %v652
  %v655 = vsel %vm653, %v648, %v650
  %v656 = vsel %vm653, %v646, %v648
  %v657 = vsel %vm653, %v644, %v646
  %v658 = vsel %vm653, %v642, %v644
  %v659 = vsel %vm653, %v652, %v642
  %v660 = vadd.f32 %v635, %v659
  %v661 = vadd.f32 %v636, %v658
  %v662 = vadd.f32 %v637, %v657
  %v663 = vadd.f32 %v638, %v656
  %v664 = vadd.f32 %v639, %v655
  %v665 = vadd.f32 %v640, %v654
  %666 = vrot.lane.b32.xlu0 %v323, 1
  %v667 = vpop.permute.xlu0 %666
  %668 = vrot.lane.b32.xlu0 %v325, 1
  %v669 = vpop.permute.xlu0 %668
  %670 = vrot.lane.b32.xlu0 %v442, 1
  %v671 = vpop.permute.xlu0 %670
  %672 = vrot.lane.b32.xlu0 %v444, 1
  %v673 = vpop.permute.xlu0 %672
  %674 = vrot.lane.b32.xlu0 %v561, 1
  %v675 = vpop.permute.xlu0 %674
  %676 = vrot.lane.b32.xlu0 %v563, 1
  %v677 = vpop.permute.xlu0 %676
  %vm678 = vcmp.lt.s32.totalorder %v608, 1
  %v679 = vsel %vm678, %v675, %v677
  %v680 = vsel %vm678, %v673, %v675
  %v681 = vsel %vm678, %v671, %v673
  %v682 = vsel %vm678, %v669, %v671
  %v683 = vsel %vm678, %v667, %v669
  %v684 = vsel %vm678, %v677, %v667
  %v685 = vadd.f32 %v660, %v684
  %v686 = vadd.f32 %v661, %v683
  %v687 = vadd.f32 %v662, %v682
  %v688 = vadd.f32 %v663, %v681
  %v689 = vadd.f32 %v664, %v680
  %v690 = vadd.f32 %v665, %v679
  %v691 = vadd.f32 %v685, %v329
  %v692 = vadd.f32 %v686, %v331
  %v693 = vadd.f32 %v687, %v448
  %v694 = vadd.f32 %v688, %v450
  %v695 = vadd.f32 %v689, %v567
  %v696 = vadd.f32 %v690, %v569
  %697 = vrot.lane.b32.xlu0 %v335, 127
  %v698 = vpop.permute.xlu0 %697
  %699 = vrot.lane.b32.xlu0 %v337, 127
  %v700 = vpop.permute.xlu0 %699
  %701 = vrot.lane.b32.xlu0 %v454, 127
  %v702 = vpop.permute.xlu0 %701
  %703 = vrot.lane.b32.xlu0 %v456, 127
  %v704 = vpop.permute.xlu0 %703
  %705 = vrot.lane.b32.xlu0 %v573, 127
  %v706 = vpop.permute.xlu0 %705
  %707 = vrot.lane.b32.xlu0 %v575, 127
  %v708 = vpop.permute.xlu0 %707
  %vm709 = vcmp.lt.s32.totalorder %v608, 127
  %v710 = vsel %vm709, %v706, %v708
  %v711 = vsel %vm709, %v704, %v706
  %v712 = vsel %vm709, %v702, %v704
  %v713 = vsel %vm709, %v700, %v702
  %v714 = vsel %vm709, %v698, %v700
  %v715 = vsel %vm709, %v708, %v698
  %v716 = vadd.f32 %v691, %v714
  %v717 = vadd.f32 %v692, %v713
  %v718 = vadd.f32 %v693, %v712
  %v719 = vadd.f32 %v694, %v711
  %v720 = vadd.f32 %v695, %v710
  %v721 = vadd.f32 %v696, %v715
  %722 = vrot.lane.b32.xlu0 %v341, 111
  %v723 = vpop.permute.xlu0 %722
  %724 = vrot.lane.b32.xlu0 %v343, 111
  %v725 = vpop.permute.xlu0 %724
  %726 = vrot.lane.b32.xlu0 %v460, 111
  %v727 = vpop.permute.xlu0 %726
  %728 = vrot.lane.b32.xlu0 %v462, 111
  %v729 = vpop.permute.xlu0 %728
  %730 = vrot.lane.b32.xlu0 %v579, 111
  %v731 = vpop.permute.xlu0 %730
  %732 = vrot.lane.b32.xlu0 %v581, 111
  %v733 = vpop.permute.xlu0 %732
  %vm734 = vcmp.lt.s32.totalorder %v608, 111
  %v735 = vsel %vm734, %v731, %v733
  %v736 = vsel %vm734, %v729, %v731
  %v737 = vsel %vm734, %v727, %v729
  %v738 = vsel %vm734, %v725, %v727
  %v739 = vsel %vm734, %v723, %v725
  %v740 = vsel %vm734, %v733, %v723
  %v741 = vadd.f32 %v716, %v739
  %v742 = vadd.f32 %v717, %v738
  %v743 = vadd.f32 %v718, %v737
  %v744 = vadd.f32 %v719, %v736
  %v745 = vadd.f32 %v720, %v735
  %v746 = vadd.f32 %v721, %v740
  %747 = vrot.lane.b32.xlu0 %v347, 110
  %v748 = vpop.permute.xlu0 %747
  %749 = vrot.lane.b32.xlu0 %v349, 110
  %v750 = vpop.permute.xlu0 %749
  %751 = vrot.lane.b32.xlu0 %v466, 110
  %v752 = vpop.permute.xlu0 %751
  %753 = vrot.lane.b32.xlu0 %v468, 110
  %v754 = vpop.permute.xlu0 %753
  %755 = vrot.lane.b32.xlu0 %v585, 110
  %v756 = vpop.permute.xlu0 %755
  %757 = vrot.lane.b32.xlu0 %v587, 110
  %v758 = vpop.permute.xlu0 %757
  %vm759 = vcmp.lt.s32.totalorder %v608, 110
  %v760 = vsel %vm759, %v756, %v758
  %v761 = vsel %vm759, %v754, %v756
  %v762 = vsel %vm759, %v752, %v754
  %v763 = vsel %vm759, %v750, %v752
  %v764 = vsel %vm759, %v748, %v750
  %v765 = vsel %vm759, %v758, %v748
  %v766 = vadd.f32 %v741, %v764
  %v767 = vadd.f32 %v742, %v763
  %v768 = vadd.f32 %v743, %v762
  %v769 = vadd.f32 %v744, %v761
  %v770 = vadd.f32 %v745, %v760
  %v771 = vadd.f32 %v746, %v765
  %772 = vrot.lane.b32.xlu0 %v353, 109
  %v773 = vpop.permute.xlu0 %772
  %774 = vrot.lane.b32.xlu0 %v355, 109
  %v775 = vpop.permute.xlu0 %774
  %776 = vrot.lane.b32.xlu0 %v472, 109
  %v777 = vpop.permute.xlu0 %776
  %778 = vrot.lane.b32.xlu0 %v474, 109
  %v779 = vpop.permute.xlu0 %778
  %780 = vrot.lane.b32.xlu0 %v591, 109
  %v781 = vpop.permute.xlu0 %780
  %782 = vrot.lane.b32.xlu0 %v593, 109
  %v783 = vpop.permute.xlu0 %782
  %vm784 = vcmp.lt.s32.totalorder %v608, 109
  %v785 = vsel %vm784, %v781, %v783
  %v786 = vsel %vm784, %v779, %v781
  %v787 = vsel %vm784, %v777, %v779
  %v788 = vsel %vm784, %v775, %v777
  %v789 = vsel %vm784, %v773, %v775
  %v790 = vsel %vm784, %v783, %v773
  %v791 = vadd.f32 %v766, %v789
  %v792 = vadd.f32 %v767, %v788
  %v793 = vadd.f32 %v768, %v787
  %v794 = vadd.f32 %v769, %v786
  %v795 = vadd.f32 %v770, %v785
  %v796 = vadd.f32 %v771, %v790
  %v797 = vmul.f32 %v791, %v150
  %v798 = vmul.f32 %v792, %v154
  %v799 = vmul.f32 %v793, %v158
  %v800 = vmul.f32 %v794, %v162
  %v801 = vmul.f32 %v795, %v166
  %v802 = vmul.f32 %v796, %v170
  %v809 = vrot.slane %v797, 4
  %v810 = vrot.slane %v798, 4
  %v811 = vrot.slane %v799, 4
  %v812 = vrot.slane %v800, 4
  %v813 = vrot.slane %v801, 4
  %v814 = vrot.slane %v802, 4
  %821 = vst [vmem:[%s11] sm:$0xf0] %v809
  %822 = vst [vmem:[%s11 + $0x8] sm:$0xf0] %v810
  %823 = vst [vmem:[%s11 + $0x10] sm:$0xf0] %v811
  %824 = vst [vmem:[%s11 + $0x18] sm:$0xf0] %v812
  %825 = vst [vmem:[%s11 + $0x20] sm:$0xf0] %v813
  %826 = vst [vmem:[%s11 + $0x28] sm:$0xf0] %v814
  %v827 = vsel %vm57, %v797, 0.0
  %v828 = vsel %vm57, %v798, 0.0
  %v829 = vadd.f32 %v827, %v828
  %v830 = vsel %vm57, %v799, 0.0
  %v831 = vadd.f32 %v829, %v830
  %v832 = vsel %vm57, %v800, 0.0
  %v833 = vadd.f32 %v831, %v832
  %v834 = vsel %vm57, %v801, 0.0
  %v835 = vadd.f32 %v833, %v834
  %v836 = vsel %vm57, %v802, 0.0
  %v837 = vadd.f32 %v835, %v836
  %838 = vadd.xlane.f32.xlu0 %v837
  %v839 = vpop.xlane.xlu0 %838
  %840 = vst.msk [vmem:[#allocation2 + $0x4] sm:$0xf] %vm71, %v839
  %v841 = vmul.f32 %v797, %v797
  %v842 = vmul.f32 %v798, %v798
  %v843 = vmul.f32 %v799, %v799
  %v844 = vmul.f32 %v800, %v800
  %v845 = vmul.f32 %v801, %v801
  %v846 = vmul.f32 %v802, %v802
  %v847 = vsel %vm57, %v841, 0.0
  %v848 = vsel %vm57, %v842, 0.0
  %v849 = vadd.f32 %v847, %v848
  %v850 = vsel %vm57, %v843, 0.0
  %v851 = vadd.f32 %v849, %v850
  %v852 = vsel %vm57, %v844, 0.0
  %v853 = vadd.f32 %v851, %v852
  %v854 = vsel %vm57, %v845, 0.0
  %v855 = vadd.f32 %v853, %v854
  %v856 = vsel %vm57, %v846, 0.0
  %v857 = vadd.f32 %v855, %v856
  %858 = vadd.xlane.f32.xlu0 %v857
  %v859 = vpop.xlane.xlu0 %858
  %860 = vst.msk [vmem:[#allocation3 + $0x4] sm:$0xf] %vm71, %v859
  %v861 = vld [vmem:[%s11] sm:$0xff]
  %v862 = vld [vmem:[%s11 + $0x8] sm:$0xff]
  %v863 = vld [vmem:[%s11 + $0x10] sm:$0xff]
  %v864 = vld [vmem:[%s11 + $0x18] sm:$0xff]
  %v865 = vld [vmem:[%s11 + $0x20] sm:$0xff]
  %v866 = vld [vmem:[%s11 + $0x28] sm:$0xff]
  %v867 = vld [vmem:[#allocation2] sm:$0xff]
  %v868 = vmul.f32 %v867, 0.001953125
  %v869 = vld [vmem:[#allocation3] sm:$0xff]
  %v870 = vmul.f32 %v869, 0.001953125
  %v871 = vmul.f32 %v868, %v868
  %v872 = vsub.f32 %v870, %v871
  %v873 = vld [vmem:[%s6] sm:$0xff]
  %v874 = vadd.f32 %v872, 1e-05
  %v875 = vrsqrt.pop %v874
  %v876 = vmul.f32 %v873, %v875
  %v877 = vld [vmem:[%s7] sm:$0xff]
  %v878 = vmul.f32 %v868, %v876
  %v879 = vsub.f32 %v877, %v878
  %881 = vset.pattern.permute.xlu0 0
  %882 = vperm.xlu0 %881, %v876
  %v883 = vpop.permute.xlu0 %882
  %v885 = vmul.f32 %v861, %v883
  %v886 = vmul.f32 %v862, %v883
  %v887 = vmul.f32 %v863, %v883
  %v888 = vmul.f32 %v864, %v883
  %v889 = vmul.f32 %v865, %v883
  %v890 = vmul.f32 %v866, %v883
  %892 = vset.pattern.permute.xlu0 0
  %893 = vperm.xlu0 %892, %v879
  %v894 = vpop.permute.xlu0 %893
  %v896 = vadd.f32 %v885, %v894
  %v897 = vadd.f32 %v886, %v894
  %v898 = vadd.f32 %v887, %v894
  %v899 = vadd.f32 %v888, %v894
  %v900 = vadd.f32 %v889, %v894
  %v901 = vadd.f32 %v890, %v894
  %v902 = vmax.f32 %v896, 0.0
  %v903 = vmax.f32 %v897, 0.0
  %v904 = vmax.f32 %v898, 0.0
  %v905 = vmax.f32 %v899, 0.0
  %v906 = vmax.f32 %v900, 0.0
  %v907 = vmax.f32 %v901, 0.0
  %v908 = vmul.f32 %v902, %v150
  %v909 = vmul.f32 %v903, %v154
  %v910 = vmul.f32 %v904, %v158
  %v911 = vmul.f32 %v905, %v162
  %v912 = vmul.f32 %v906, %v166
  %v913 = vmul.f32 %v907, %v170
  %v914 = vld [vmem:[%s5] sm:$0xff]
  %v915 = vld [vmem:[%s5 + $0x8] sm:$0xff]
  %v916 = vld [vmem:[%s5 + $0x10] sm:$0xff]
  %v917 = vld [vmem:[%s5 + $0x18] sm:$0xff]
  %v918 = vld [vmem:[%s5 + $0x20] sm:$0xff]
  %v919 = vld [vmem:[%s5 + $0x28] sm:$0xff]
  %v920 = vld [vmem:[%s5 + $0x30] sm:$0xff]
  %v921 = vld [vmem:[%s5 + $0x38] sm:$0xff]
  %v922 = vld [vmem:[%s5 + $0x40] sm:$0xff]
  %vm923 = vcmask 64512
  %v925 = vsel %vm923, %v914, 0
  %v928 = vsel %vm923, %v915, 0
  %v931 = vsel %vm923, %v916, 0
  %v934 = vsel %vm923, %v917, 0
  %v937 = vsel %vm923, %v918, 0
  %v940 = vsel %vm923, %v919, 0
  %v943 = vsel %vm923, %v920, 0
  %v946 = vsel %vm923, %v921, 0
  %v949 = vsel %vm923, %v922, 0
  %951 = vmatprep.subr.mxu0 0.0
  %952 = vmatpush1.msra.mxu0 0.0
  %953 = vmatprep.subr.mxu0 0.0
  %954 = vmatpush1.msra.mxu0 0.0
  %955 = vmatprep.subr.mxu0 0.0
  %956 = vmatpush1.msra.mxu0 0.0
  %957 = vmatprep.subr.mxu0 0.0
  %958 = vmatpush1.msra.mxu0 0.0
  %959 = vmatprep.subr.mxu0 0.0
  %960 = vmatpush1.msra.mxu0 0.0
  %961 = vmatprep.subr.mxu0 0.0
  %962 = vmatpush1.msra.mxu0 0.0
  %963 = vmatprep.subr.mxu0 0.0
  %964 = vmatpush1.msra.mxu0 0.0
  %965 = vmatprep.subr.mxu0 0.0
  %966 = vmatpush1.msra.mxu0 0.0
  %967 = vmatprep.subr.mxu0 0.0
  %968 = vmatpush1.msra.mxu0 0.0
  %969 = vmatprep.subr.mxu0 0.0
  %970 = vmatpush1.msra.mxu0 0.0
  %971 = vmatprep.subr.mxu0 0.0
  %972 = vmatpush1.msra.mxu0 0.0
  %973 = vmatprep.subr.mxu0 0.0
  %974 = vmatpush1.msra.mxu0 0.0
  %975 = vmatprep.subr.mxu0 0.0
  %976 = vmatpush1.msra.mxu0 0.0
  %977 = vmatprep.subr.mxu0 0.0
  %978 = vmatpush1.msra.mxu0 0.0
  %979 = vmatprep.subr.mxu0 0.0
  %980 = vmatpush1.msra.mxu0 0.0
  %981 = vmatprep.subr.mxu0 %v909
  %982 = vmatpush1.msra.mxu0 %v908
  %983 = vmatprep.subr.mxu0 0.0
  %984 = vmatpush2.msra.mxu0 0.0
  %985 = vmatprep.subr.mxu0 0.0
  %986 = vmatpush2.msra.mxu0 0.0
  %987 = vmatprep.subr.mxu0 0.0
  %988 = vmatpush2.msra.mxu0 0.0
  %989 = vmatprep.subr.mxu0 0.0
  %990 = vmatpush2.msra.mxu0 0.0
  %991 = vmatprep.subr.mxu0 0.0
  %992 = vmatpush2.msra.mxu0 0.0
  %993 = vmatprep.subr.mxu0 0.0
  %994 = vmatpush2.msra.mxu0 0.0
  %995 = vmatprep.subr.mxu0 0.0
  %996 = vmatpush2.msra.mxu0 0.0
  %997 = vmatprep.subr.mxu0 0.0
  %998 = vmatpush2.msra.mxu0 0.0
  %999 = vmatprep.subr.mxu0 0.0
  %1000 = vmatpush2.msra.mxu0 0.0
  %1001 = vmatprep.subr.mxu0 0.0
  %1002 = vmatpush2.msra.mxu0 0.0
  %1003 = vmatprep.subr.mxu0 0.0
  %1004 = vmatpush2.msra.mxu0 0.0
  %1005 = vmatprep.subr.mxu0 0.0
  %1006 = vmatpush2.msra.mxu0 0.0
  %1007 = vmatprep.subr.mxu0 0.0
  %1008 = vmatpush2.msra.mxu0 0.0
  %1009 = vmatprep.subr.mxu0 0.0
  %1010 = vmatpush2.msra.mxu0 0.0
  %1011 = vmatprep.subr.mxu0 0.0
  %1012 = vmatpush2.msra.mxu0 0.0
  %1013 = vmatprep.subr.mxu0 0.0
  %1014 = vmatpush2.msra.mxu0 0.0
  %1015 = vmatprep.mubr.f32.mxu0 0.0
  %1016 = vmatmul.mubr.f32.gmra.mxu0 %v925
  %v1017 = vpop.f32.mrf.mxu0
  %v1018 = vadd.f32 0.0, %v1017
  %v1019 = vpop.f32.mrf.mxu0
  %v1020 = vadd.f32 0.0, %v1019
  %1021 = vmatprep.mubr.f32.mxu0 0.0
  %1022 = vmatmul.mubr.f32.gmra.mxu0 %v928
  %v1023 = vpop.f32.mrf.mxu0
  %v1024 = vadd.f32 0.0, %v1023
  %v1025 = vpop.f32.mrf.mxu0
  %v1026 = vadd.f32 0.0, %v1025
  %1027 = vmatprep.mubr.f32.mxu0 0.0
  %1028 = vmatmul.mubr.f32.gmra.mxu0 %v931
  %v1029 = vpop.f32.mrf.mxu0
  %v1030 = vadd.f32 0.0, %v1029
  %v1031 = vpop.f32.mrf.mxu0
  %v1032 = vadd.f32 0.0, %v1031
  %1033 = vmatprep.mubr.f32.mxu0 0.0
  %1034 = vmatmul.mubr.f32.gmra.mxu0 %v934
  %v1035 = vpop.f32.mrf.mxu0
  %v1036 = vadd.f32 0.0, %v1035
  %v1037 = vpop.f32.mrf.mxu0
  %v1038 = vadd.f32 0.0, %v1037
  %1039 = vmatprep.mubr.f32.mxu0 0.0
  %1040 = vmatmul.mubr.f32.gmra.mxu0 %v937
  %v1041 = vpop.f32.mrf.mxu0
  %v1042 = vadd.f32 0.0, %v1041
  %v1043 = vpop.f32.mrf.mxu0
  %v1044 = vadd.f32 0.0, %v1043
  %1045 = vmatprep.mubr.f32.mxu0 0.0
  %1046 = vmatmul.mubr.f32.gmra.mxu0 %v940
  %v1047 = vpop.f32.mrf.mxu0
  %v1048 = vadd.f32 0.0, %v1047
  %v1049 = vpop.f32.mrf.mxu0
  %v1050 = vadd.f32 0.0, %v1049
  %1051 = vmatprep.mubr.f32.mxu0 0.0
  %1052 = vmatmul.mubr.f32.gmra.mxu0 %v943
  %v1053 = vpop.f32.mrf.mxu0
  %v1054 = vadd.f32 0.0, %v1053
  %v1055 = vpop.f32.mrf.mxu0
  %v1056 = vadd.f32 0.0, %v1055
  %1057 = vmatprep.mubr.f32.mxu0 0.0
  %1058 = vmatmul.mubr.f32.gmra.mxu0 %v946
  %v1059 = vpop.f32.mrf.mxu0
  %v1060 = vadd.f32 0.0, %v1059
  %v1061 = vpop.f32.mrf.mxu0
  %v1062 = vadd.f32 0.0, %v1061
  %1063 = vmatprep.mubr.f32.mxu0 0.0
  %1064 = vmatmul.mubr.f32.gmra.mxu0 %v949
  %v1065 = vpop.f32.mrf.mxu0
  %v1066 = vadd.f32 0.0, %v1065
  %v1067 = vpop.f32.mrf.mxu0
  %v1068 = vadd.f32 0.0, %v1067
  %1069 = vdwg.mxu0
  %1070 = vmatprep.subr.mxu0 0.0
  %1071 = vmatpush1.msra.mxu0 0.0
  %1072 = vmatprep.subr.mxu0 0.0
  %1073 = vmatpush1.msra.mxu0 0.0
  %1074 = vmatprep.subr.mxu0 0.0
  %1075 = vmatpush1.msra.mxu0 0.0
  %1076 = vmatprep.subr.mxu0 0.0
  %1077 = vmatpush1.msra.mxu0 0.0
  %1078 = vmatprep.subr.mxu0 0.0
  %1079 = vmatpush1.msra.mxu0 0.0
  %1080 = vmatprep.subr.mxu0 0.0
  %1081 = vmatpush1.msra.mxu0 0.0
  %1082 = vmatprep.subr.mxu0 0.0
  %1083 = vmatpush1.msra.mxu0 0.0
  %1084 = vmatprep.subr.mxu0 0.0
  %1085 = vmatpush1.msra.mxu0 0.0
  %1086 = vmatprep.subr.mxu0 0.0
  %1087 = vmatpush1.msra.mxu0 0.0
  %1088 = vmatprep.subr.mxu0 0.0
  %1089 = vmatpush1.msra.mxu0 0.0
  %1090 = vmatprep.subr.mxu0 0.0
  %1091 = vmatpush1.msra.mxu0 0.0
  %1092 = vmatprep.subr.mxu0 0.0
  %1093 = vmatpush1.msra.mxu0 0.0
  %1094 = vmatprep.subr.mxu0 0.0
  %1095 = vmatpush1.msra.mxu0 0.0
  %1096 = vmatprep.subr.mxu0 0.0
  %1097 = vmatpush1.msra.mxu0 0.0
  %1098 = vmatprep.subr.mxu0 0.0
  %1099 = vmatpush1.msra.mxu0 0.0
  %1100 = vmatprep.subr.mxu0 %v911
  %1101 = vmatpush1.msra.mxu0 %v910
  %1102 = vmatprep.subr.mxu0 0.0
  %1103 = vmatpush2.msra.mxu0 0.0
  %1104 = vmatprep.subr.mxu0 0.0
  %1105 = vmatpush2.msra.mxu0 0.0
  %1106 = vmatprep.subr.mxu0 0.0
  %1107 = vmatpush2.msra.mxu0 0.0
  %1108 = vmatprep.subr.mxu0 0.0
  %1109 = vmatpush2.msra.mxu0 0.0
  %1110 = vmatprep.subr.mxu0 0.0
  %1111 = vmatpush2.msra.mxu0 0.0
  %1112 = vmatprep.subr.mxu0 0.0
  %1113 = vmatpush2.msra.mxu0 0.0
  %1114 = vmatprep.subr.mxu0 0.0
  %1115 = vmatpush2.msra.mxu0 0.0
  %1116 = vmatprep.subr.mxu0 0.0
  %1117 = vmatpush2.msra.mxu0 0.0
  %1118 = vmatprep.subr.mxu0 0.0
  %1119 = vmatpush2.msra.mxu0 0.0
  %1120 = vmatprep.subr.mxu0 0.0
  %1121 = vmatpush2.msra.mxu0 0.0
  %1122 = vmatprep.subr.mxu0 0.0
  %1123 = vmatpush2.msra.mxu0 0.0
  %1124 = vmatprep.subr.mxu0 0.0
  %1125 = vmatpush2.msra.mxu0 0.0
  %1126 = vmatprep.subr.mxu0 0.0
  %1127 = vmatpush2.msra.mxu0 0.0
  %1128 = vmatprep.subr.mxu0 0.0
  %1129 = vmatpush2.msra.mxu0 0.0
  %1130 = vmatprep.subr.mxu0 0.0
  %1131 = vmatpush2.msra.mxu0 0.0
  %1132 = vmatprep.subr.mxu0 0.0
  %1133 = vmatpush2.msra.mxu0 0.0
  %1134 = vmatprep.mubr.f32.mxu0 0.0
  %1135 = vmatmul.mubr.f32.gmra.mxu0 %v925
  %v1136 = vpop.f32.mrf.mxu0
  %v1137 = vadd.f32 0.0, %v1136
  %v1138 = vpop.f32.mrf.mxu0
  %v1139 = vadd.f32 0.0, %v1138
  %1140 = vmatprep.mubr.f32.mxu0 0.0
  %1141 = vmatmul.mubr.f32.gmra.mxu0 %v928
  %v1142 = vpop.f32.mrf.mxu0
  %v1143 = vadd.f32 0.0, %v1142
  %v1144 = vpop.f32.mrf.mxu0
  %v1145 = vadd.f32 0.0, %v1144
  %1146 = vmatprep.mubr.f32.mxu0 0.0
  %1147 = vmatmul.mubr.f32.gmra.mxu0 %v931
  %v1148 = vpop.f32.mrf.mxu0
  %v1149 = vadd.f32 0.0, %v1148
  %v1150 = vpop.f32.mrf.mxu0
  %v1151 = vadd.f32 0.0, %v1150
  %1152 = vmatprep.mubr.f32.mxu0 0.0
  %1153 = vmatmul.mubr.f32.gmra.mxu0 %v934
  %v1154 = vpop.f32.mrf.mxu0
  %v1155 = vadd.f32 0.0, %v1154
  %v1156 = vpop.f32.mrf.mxu0
  %v1157 = vadd.f32 0.0, %v1156
  %1158 = vmatprep.mubr.f32.mxu0 0.0
  %1159 = vmatmul.mubr.f32.gmra.mxu0 %v937
  %v1160 = vpop.f32.mrf.mxu0
  %v1161 = vadd.f32 0.0, %v1160
  %v1162 = vpop.f32.mrf.mxu0
  %v1163 = vadd.f32 0.0, %v1162
  %1164 = vmatprep.mubr.f32.mxu0 0.0
  %1165 = vmatmul.mubr.f32.gmra.mxu0 %v940
  %v1166 = vpop.f32.mrf.mxu0
  %v1167 = vadd.f32 0.0, %v1166
  %v1168 = vpop.f32.mrf.mxu0
  %v1169 = vadd.f32 0.0, %v1168
  %1170 = vmatprep.mubr.f32.mxu0 0.0
  %1171 = vmatmul.mubr.f32.gmra.mxu0 %v943
  %v1172 = vpop.f32.mrf.mxu0
  %v1173 = vadd.f32 0.0, %v1172
  %v1174 = vpop.f32.mrf.mxu0
  %v1175 = vadd.f32 0.0, %v1174
  %1176 = vmatprep.mubr.f32.mxu0 0.0
  %1177 = vmatmul.mubr.f32.gmra.mxu0 %v946
  %v1178 = vpop.f32.mrf.mxu0
  %v1179 = vadd.f32 0.0, %v1178
  %v1180 = vpop.f32.mrf.mxu0
  %v1181 = vadd.f32 0.0, %v1180
  %1182 = vmatprep.mubr.f32.mxu0 0.0
  %1183 = vmatmul.mubr.f32.gmra.mxu0 %v949
  %v1184 = vpop.f32.mrf.mxu0
  %v1185 = vadd.f32 0.0, %v1184
  %v1186 = vpop.f32.mrf.mxu0
  %v1187 = vadd.f32 0.0, %v1186
  %1188 = vdwg.mxu0
  %1189 = vmatprep.subr.mxu0 0.0
  %1190 = vmatpush1.msra.mxu0 0.0
  %1191 = vmatprep.subr.mxu0 0.0
  %1192 = vmatpush1.msra.mxu0 0.0
  %1193 = vmatprep.subr.mxu0 0.0
  %1194 = vmatpush1.msra.mxu0 0.0
  %1195 = vmatprep.subr.mxu0 0.0
  %1196 = vmatpush1.msra.mxu0 0.0
  %1197 = vmatprep.subr.mxu0 0.0
  %1198 = vmatpush1.msra.mxu0 0.0
  %1199 = vmatprep.subr.mxu0 0.0
  %1200 = vmatpush1.msra.mxu0 0.0
  %1201 = vmatprep.subr.mxu0 0.0
  %1202 = vmatpush1.msra.mxu0 0.0
  %1203 = vmatprep.subr.mxu0 0.0
  %1204 = vmatpush1.msra.mxu0 0.0
  %1205 = vmatprep.subr.mxu0 0.0
  %1206 = vmatpush1.msra.mxu0 0.0
  %1207 = vmatprep.subr.mxu0 0.0
  %1208 = vmatpush1.msra.mxu0 0.0
  %1209 = vmatprep.subr.mxu0 0.0
  %1210 = vmatpush1.msra.mxu0 0.0
  %1211 = vmatprep.subr.mxu0 0.0
  %1212 = vmatpush1.msra.mxu0 0.0
  %1213 = vmatprep.subr.mxu0 0.0
  %1214 = vmatpush1.msra.mxu0 0.0
  %1215 = vmatprep.subr.mxu0 0.0
  %1216 = vmatpush1.msra.mxu0 0.0
  %1217 = vmatprep.subr.mxu0 0.0
  %1218 = vmatpush1.msra.mxu0 0.0
  %1219 = vmatprep.subr.mxu0 %v913
  %1220 = vmatpush1.msra.mxu0 %v912
  %1221 = vmatprep.subr.mxu0 0.0
  %1222 = vmatpush2.msra.mxu0 0.0
  %1223 = vmatprep.subr.mxu0 0.0
  %1224 = vmatpush2.msra.mxu0 0.0
  %1225 = vmatprep.subr.mxu0 0.0
  %1226 = vmatpush2.msra.mxu0 0.0
  %1227 = vmatprep.subr.mxu0 0.0
  %1228 = vmatpush2.msra.mxu0 0.0
  %1229 = vmatprep.subr.mxu0 0.0
  %1230 = vmatpush2.msra.mxu0 0.0
  %1231 = vmatprep.subr.mxu0 0.0
  %1232 = vmatpush2.msra.mxu0 0.0
  %1233 = vmatprep.subr.mxu0 0.0
  %1234 = vmatpush2.msra.mxu0 0.0
  %1235 = vmatprep.subr.mxu0 0.0
  %1236 = vmatpush2.msra.mxu0 0.0
  %1237 = vmatprep.subr.mxu0 0.0
  %1238 = vmatpush2.msra.mxu0 0.0
  %1239 = vmatprep.subr.mxu0 0.0
  %1240 = vmatpush2.msra.mxu0 0.0
  %1241 = vmatprep.subr.mxu0 0.0
  %1242 = vmatpush2.msra.mxu0 0.0
  %1243 = vmatprep.subr.mxu0 0.0
  %1244 = vmatpush2.msra.mxu0 0.0
  %1245 = vmatprep.subr.mxu0 0.0
  %1246 = vmatpush2.msra.mxu0 0.0
  %1247 = vmatprep.subr.mxu0 0.0
  %1248 = vmatpush2.msra.mxu0 0.0
  %1249 = vmatprep.subr.mxu0 0.0
  %1250 = vmatpush2.msra.mxu0 0.0
  %1251 = vmatprep.subr.mxu0 0.0
  %1252 = vmatpush2.msra.mxu0 0.0
  %1253 = vmatprep.mubr.f32.mxu0 0.0
  %1254 = vmatmul.mubr.f32.gmra.mxu0 %v925
  %v1255 = vpop.f32.mrf.mxu0
  %v1256 = vadd.f32 0.0, %v1255
  %v1257 = vpop.f32.mrf.mxu0
  %v1258 = vadd.f32 0.0, %v1257
  %1259 = vmatprep.mubr.f32.mxu0 0.0
  %1260 = vmatmul.mubr.f32.gmra.mxu0 %v928
  %v1261 = vpop.f32.mrf.mxu0
  %v1262 = vadd.f32 0.0, %v1261
  %v1263 = vpop.f32.mrf.mxu0
  %v1264 = vadd.f32 0.0, %v1263
  %1265 = vmatprep.mubr.f32.mxu0 0.0
  %1266 = vmatmul.mubr.f32.gmra.mxu0 %v931
  %v1267 = vpop.f32.mrf.mxu0
  %v1268 = vadd.f32 0.0, %v1267
  %v1269 = vpop.f32.mrf.mxu0
  %v1270 = vadd.f32 0.0, %v1269
  %1271 = vmatprep.mubr.f32.mxu0 0.0
  %1272 = vmatmul.mubr.f32.gmra.mxu0 %v934
  %v1273 = vpop.f32.mrf.mxu0
  %v1274 = vadd.f32 0.0, %v1273
  %v1275 = vpop.f32.mrf.mxu0
  %v1276 = vadd.f32 0.0, %v1275
  %1277 = vmatprep.mubr.f32.mxu0 0.0
  %1278 = vmatmul.mubr.f32.gmra.mxu0 %v937
  %v1279 = vpop.f32.mrf.mxu0
  %v1280 = vadd.f32 0.0, %v1279
  %v1281 = vpop.f32.mrf.mxu0
  %v1282 = vadd.f32 0.0, %v1281
  %1283 = vmatprep.mubr.f32.mxu0 0.0
  %1284 = vmatmul.mubr.f32.gmra.mxu0 %v940
  %v1285 = vpop.f32.mrf.mxu0
  %v1286 = vadd.f32 0.0, %v1285
  %v1287 = vpop.f32.mrf.mxu0
  %v1288 = vadd.f32 0.0, %v1287
  %1289 = vmatprep.mubr.f32.mxu0 0.0
  %1290 = vmatmul.mubr.f32.gmra.mxu0 %v943
  %v1291 = vpop.f32.mrf.mxu0
  %v1292 = vadd.f32 0.0, %v1291
  %v1293 = vpop.f32.mrf.mxu0
  %v1294 = vadd.f32 0.0, %v1293
  %1295 = vmatprep.mubr.f32.mxu0 0.0
  %1296 = vmatmul.mubr.f32.gmra.mxu0 %v946
  %v1297 = vpop.f32.mrf.mxu0
  %v1298 = vadd.f32 0.0, %v1297
  %v1299 = vpop.f32.mrf.mxu0
  %v1300 = vadd.f32 0.0, %v1299
  %1301 = vmatprep.mubr.f32.mxu0 0.0
  %1302 = vmatmul.mubr.f32.gmra.mxu0 %v949
  %v1303 = vpop.f32.mrf.mxu0
  %v1304 = vadd.f32 0.0, %v1303
  %v1305 = vpop.f32.mrf.mxu0
  %v1306 = vadd.f32 0.0, %v1305
  %1307 = vdwg.mxu0
  %1308 = vrot.lane.b32.xlu0 %v1018, 19
  %v1309 = vpop.permute.xlu0 %1308
  %1310 = vrot.lane.b32.xlu0 %v1020, 19
  %v1311 = vpop.permute.xlu0 %1310
  %1312 = vrot.lane.b32.xlu0 %v1137, 19
  %v1313 = vpop.permute.xlu0 %1312
  %1314 = vrot.lane.b32.xlu0 %v1139, 19
  %v1315 = vpop.permute.xlu0 %1314
  %1316 = vrot.lane.b32.xlu0 %v1256, 19
  %v1317 = vpop.permute.xlu0 %1316
  %1318 = vrot.lane.b32.xlu0 %v1258, 19
  %v1319 = vpop.permute.xlu0 %1318
  %v1320 = vsel %vm609, %v1317, %v1319
  %v1321 = vsel %vm609, %v1315, %v1317
  %v1322 = vsel %vm609, %v1313, %v1315
  %v1323 = vsel %vm609, %v1311, %v1313
  %v1324 = vsel %vm609, %v1309, %v1311
  %v1325 = vsel %vm609, %v1319, %v1309
  %1326 = vrot.lane.b32.xlu0 %v1024, 18
  %v1327 = vpop.permute.xlu0 %1326
  %1328 = vrot.lane.b32.xlu0 %v1026, 18
  %v1329 = vpop.permute.xlu0 %1328
  %1330 = vrot.lane.b32.xlu0 %v1143, 18
  %v1331 = vpop.permute.xlu0 %1330
  %1332 = vrot.lane.b32.xlu0 %v1145, 18
  %v1333 = vpop.permute.xlu0 %1332
  %1334 = vrot.lane.b32.xlu0 %v1262, 18
  %v1335 = vpop.permute.xlu0 %1334
  %1336 = vrot.lane.b32.xlu0 %v1264, 18
  %v1337 = vpop.permute.xlu0 %1336
  %v1338 = vsel %vm628, %v1335, %v1337
  %v1339 = vsel %vm628, %v1333, %v1335
  %v1340 = vsel %vm628, %v1331, %v1333
  %v1341 = vsel %vm628, %v1329, %v1331
  %v1342 = vsel %vm628, %v1327, %v1329
  %v1343 = vsel %vm628, %v1337, %v1327
  %v1344 = vadd.f32 %v1325, %v1343
  %v1345 = vadd.f32 %v1324, %v1342
  %v1346 = vadd.f32 %v1323, %v1341
  %v1347 = vadd.f32 %v1322, %v1340
  %v1348 = vadd.f32 %v1321, %v1339
  %v1349 = vadd.f32 %v1320, %v1338
  %1350 = vrot.lane.b32.xlu0 %v1030, 17
  %v1351 = vpop.permute.xlu0 %1350
  %1352 = vrot.lane.b32.xlu0 %v1032, 17
  %v1353 = vpop.permute.xlu0 %1352
  %1354 = vrot.lane.b32.xlu0 %v1149, 17
  %v1355 = vpop.permute.xlu0 %1354
  %1356 = vrot.lane.b32.xlu0 %v1151, 17
  %v1357 = vpop.permute.xlu0 %1356
  %1358 = vrot.lane.b32.xlu0 %v1268, 17
  %v1359 = vpop.permute.xlu0 %1358
  %1360 = vrot.lane.b32.xlu0 %v1270, 17
  %v1361 = vpop.permute.xlu0 %1360
  %v1362 = vsel %vm653, %v1359, %v1361
  %v1363 = vsel %vm653, %v1357, %v1359
  %v1364 = vsel %vm653, %v1355, %v1357
  %v1365 = vsel %vm653, %v1353, %v1355
  %v1366 = vsel %vm653, %v1351, %v1353
  %v1367 = vsel %vm653, %v1361, %v1351
  %v1368 = vadd.f32 %v1344, %v1367
  %v1369 = vadd.f32 %v1345, %v1366
  %v1370 = vadd.f32 %v1346, %v1365
  %v1371 = vadd.f32 %v1347, %v1364
  %v1372 = vadd.f32 %v1348, %v1363
  %v1373 = vadd.f32 %v1349, %v1362
  %1374 = vrot.lane.b32.xlu0 %v1036, 1
  %v1375 = vpop.permute.xlu0 %1374
  %1376 = vrot.lane.b32.xlu0 %v1038, 1
  %v1377 = vpop.permute.xlu0 %1376
  %1378 = vrot.lane.b32.xlu0 %v1155, 1
  %v1379 = vpop.permute.xlu0 %1378
  %1380 = vrot.lane.b32.xlu0 %v1157, 1
  %v1381 = vpop.permute.xlu0 %1380
  %1382 = vrot.lane.b32.xlu0 %v1274, 1
  %v1383 = vpop.permute.xlu0 %1382
  %1384 = vrot.lane.b32.xlu0 %v1276, 1
  %v1385 = vpop.permute.xlu0 %1384
  %v1386 = vsel %vm678, %v1383, %v1385
  %v1387 = vsel %vm678, %v1381, %v1383
  %v1388 = vsel %vm678, %v1379, %v1381
  %v1389 = vsel %vm678, %v1377, %v1379
  %v1390 = vsel %vm678, %v1375, %v1377
  %v1391 = vsel %vm678, %v1385, %v1375
  %v1392 = vadd.f32 %v1368, %v1391
  %v1393 = vadd.f32 %v1369, %v1390
  %v1394 = vadd.f32 %v1370, %v1389
  %v1395 = vadd.f32 %v1371, %v1388
  %v1396 = vadd.f32 %v1372, %v1387
  %v1397 = vadd.f32 %v1373, %v1386
  %v1398 = vadd.f32 %v1392, %v1042
  %v1399 = vadd.f32 %v1393, %v1044
  %v1400 = vadd.f32 %v1394, %v1161
  %v1401 = vadd.f32 %v1395, %v1163
  %v1402 = vadd.f32 %v1396, %v1280
  %v1403 = vadd.f32 %v1397, %v1282
  %1404 = vrot.lane.b32.xlu0 %v1048, 127
  %v1405 = vpop.permute.xlu0 %1404
  %1406 = vrot.lane.b32.xlu0 %v1050, 127
  %v1407 = vpop.permute.xlu0 %1406
  %1408 = vrot.lane.b32.xlu0 %v1167, 127
  %v1409 = vpop.permute.xlu0 %1408
  %1410 = vrot.lane.b32.xlu0 %v1169, 127
  %v1411 = vpop.permute.xlu0 %1410
  %1412 = vrot.lane.b32.xlu0 %v1286, 127
  %v1413 = vpop.permute.xlu0 %1412
  %1414 = vrot.lane.b32.xlu0 %v1288, 127
  %v1415 = vpop.permute.xlu0 %1414
  %v1416 = vsel %vm709, %v1413, %v1415
  %v1417 = vsel %vm709, %v1411, %v1413
  %v1418 = vsel %vm709, %v1409, %v1411
  %v1419 = vsel %vm709, %v1407, %v1409
  %v1420 = vsel %vm709, %v1405, %v1407
  %v1421 = vsel %vm709, %v1415, %v1405
  %v1422 = vadd.f32 %v1398, %v1420
  %v1423 = vadd.f32 %v1399, %v1419
  %v1424 = vadd.f32 %v1400, %v1418
  %v1425 = vadd.f32 %v1401, %v1417
  %v1426 = vadd.f32 %v1402, %v1416
  %v1427 = vadd.f32 %v1403, %v1421
  %1428 = vrot.lane.b32.xlu0 %v1054, 111
  %v1429 = vpop.permute.xlu0 %1428
  %1430 = vrot.lane.b32.xlu0 %v1056, 111
  %v1431 = vpop.permute.xlu0 %1430
  %1432 = vrot.lane.b32.xlu0 %v1173, 111
  %v1433 = vpop.permute.xlu0 %1432
  %1434 = vrot.lane.b32.xlu0 %v1175, 111
  %v1435 = vpop.permute.xlu0 %1434
  %1436 = vrot.lane.b32.xlu0 %v1292, 111
  %v1437 = vpop.permute.xlu0 %1436
  %1438 = vrot.lane.b32.xlu0 %v1294, 111
  %v1439 = vpop.permute.xlu0 %1438
  %v1440 = vsel %vm734, %v1437, %v1439
  %v1441 = vsel %vm734, %v1435, %v1437
  %v1442 = vsel %vm734, %v1433, %v1435
  %v1443 = vsel %vm734, %v1431, %v1433
  %v1444 = vsel %vm734, %v1429, %v1431
  %v1445 = vsel %vm734, %v1439, %v1429
  %v1446 = vadd.f32 %v1422, %v1444
  %v1447 = vadd.f32 %v1423, %v1443
  %v1448 = vadd.f32 %v1424, %v1442
  %v1449 = vadd.f32 %v1425, %v1441
  %v1450 = vadd.f32 %v1426, %v1440
  %v1451 = vadd.f32 %v1427, %v1445
  %1452 = vrot.lane.b32.xlu0 %v1060, 110
  %v1453 = vpop.permute.xlu0 %1452
  %1454 = vrot.lane.b32.xlu0 %v1062, 110
  %v1455 = vpop.permute.xlu0 %1454
  %1456 = vrot.lane.b32.xlu0 %v1179, 110
  %v1457 = vpop.permute.xlu0 %1456
  %1458 = vrot.lane.b32.xlu0 %v1181, 110
  %v1459 = vpop.permute.xlu0 %1458
  %1460 = vrot.lane.b32.xlu0 %v1298, 110
  %v1461 = vpop.permute.xlu0 %1460
  %1462 = vrot.lane.b32.xlu0 %v1300, 110
  %v1463 = vpop.permute.xlu0 %1462
  %v1464 = vsel %vm759, %v1461, %v1463
  %v1465 = vsel %vm759, %v1459, %v1461
  %v1466 = vsel %vm759, %v1457, %v1459
  %v1467 = vsel %vm759, %v1455, %v1457
  %v1468 = vsel %vm759, %v1453, %v1455
  %v1469 = vsel %vm759, %v1463, %v1453
  %v1470 = vadd.f32 %v1446, %v1468
  %v1471 = vadd.f32 %v1447, %v1467
  %v1472 = vadd.f32 %v1448, %v1466
  %v1473 = vadd.f32 %v1449, %v1465
  %v1474 = vadd.f32 %v1450, %v1464
  %v1475 = vadd.f32 %v1451, %v1469
  %1476 = vrot.lane.b32.xlu0 %v1066, 109
  %v1477 = vpop.permute.xlu0 %1476
  %1478 = vrot.lane.b32.xlu0 %v1068, 109
  %v1479 = vpop.permute.xlu0 %1478
  %1480 = vrot.lane.b32.xlu0 %v1185, 109
  %v1481 = vpop.permute.xlu0 %1480
  %1482 = vrot.lane.b32.xlu0 %v1187, 109
  %v1483 = vpop.permute.xlu0 %1482
  %1484 = vrot.lane.b32.xlu0 %v1304, 109
  %v1485 = vpop.permute.xlu0 %1484
  %1486 = vrot.lane.b32.xlu0 %v1306, 109
  %v1487 = vpop.permute.xlu0 %1486
  %v1488 = vsel %vm784, %v1485, %v1487
  %v1489 = vsel %vm784, %v1483, %v1485
  %v1490 = vsel %vm784, %v1481, %v1483
  %v1491 = vsel %vm784, %v1479, %v1481
  %v1492 = vsel %vm784, %v1477, %v1479
  %v1493 = vsel %vm784, %v1487, %v1477
  %v1494 = vadd.f32 %v1470, %v1492
  %v1495 = vadd.f32 %v1471, %v1491
  %v1496 = vadd.f32 %v1472, %v1490
  %v1497 = vadd.f32 %v1473, %v1489
  %v1498 = vadd.f32 %v1474, %v1488
  %v1499 = vadd.f32 %v1475, %v1493
  %v1500 = vmul.f32 %v1494, %v150
  %v1501 = vmul.f32 %v1495, %v154
  %v1502 = vmul.f32 %v1496, %v158
  %v1503 = vmul.f32 %v1497, %v162
  %v1504 = vmul.f32 %v1498, %v166
  %v1505 = vmul.f32 %v1499, %v170
  %1506 = vst [vmem:[%s11 + $0x30] sm:$0xf] %v1500
  %1507 = vst [vmem:[%s11 + $0x38] sm:$0xf] %v1501
  %1508 = vst [vmem:[%s11 + $0x40] sm:$0xf] %v1502
  %1509 = vst [vmem:[%s11 + $0x48] sm:$0xf] %v1503
  %1510 = vst [vmem:[%s11 + $0x50] sm:$0xf] %v1504
  %1511 = vst [vmem:[%s11 + $0x58] sm:$0xf] %v1505
  %v1512 = vsel %vm57, %v1500, 0.0
  %v1513 = vsel %vm57, %v1501, 0.0
  %v1514 = vadd.f32 %v1512, %v1513
  %v1515 = vsel %vm57, %v1502, 0.0
  %v1516 = vadd.f32 %v1514, %v1515
  %v1517 = vsel %vm57, %v1503, 0.0
  %v1518 = vadd.f32 %v1516, %v1517
  %v1519 = vsel %vm57, %v1504, 0.0
  %v1520 = vadd.f32 %v1518, %v1519
  %v1521 = vsel %vm57, %v1505, 0.0
  %v1522 = vadd.f32 %v1520, %v1521
  %1523 = vadd.xlane.f32.xlu0 %v1522
  %v1524 = vpop.xlane.xlu0 %1523
  %1525 = vst.msk [vmem:[#allocation2 + $0x8] sm:$0xf] %vm71, %v1524
  %v1526 = vmul.f32 %v1500, %v1500
  %v1527 = vmul.f32 %v1501, %v1501
  %v1528 = vmul.f32 %v1502, %v1502
  %v1529 = vmul.f32 %v1503, %v1503
  %v1530 = vmul.f32 %v1504, %v1504
  %v1531 = vmul.f32 %v1505, %v1505
  %v1532 = vsel %vm57, %v1526, 0.0
  %v1533 = vsel %vm57, %v1527, 0.0
  %v1534 = vadd.f32 %v1532, %v1533
  %v1535 = vsel %vm57, %v1528, 0.0
  %v1536 = vadd.f32 %v1534, %v1535
  %v1537 = vsel %vm57, %v1529, 0.0
  %v1538 = vadd.f32 %v1536, %v1537
  %v1539 = vsel %vm57, %v1530, 0.0
  %v1540 = vadd.f32 %v1538, %v1539
  %v1541 = vsel %vm57, %v1531, 0.0
  %v1542 = vadd.f32 %v1540, %v1541
  %1543 = vadd.xlane.f32.xlu0 %v1542
  %v1544 = vpop.xlane.xlu0 %1543
  %1545 = vst.msk [vmem:[#allocation3 + $0x8] sm:$0xf] %vm71, %v1544
  %v1546 = vld [vmem:[%s11] sm:$0xff]
  %v1547 = vld [vmem:[%s11 + $0x8] sm:$0xff]
  %v1548 = vld [vmem:[%s11 + $0x10] sm:$0xff]
  %v1549 = vld [vmem:[%s11 + $0x18] sm:$0xff]
  %v1550 = vld [vmem:[%s11 + $0x20] sm:$0xff]
  %v1551 = vld [vmem:[%s11 + $0x28] sm:$0xff]
  %v1552 = vld [vmem:[%s11 + $0x30] sm:$0xf]
  %v1553 = vld [vmem:[%s11 + $0x38] sm:$0xf]
  %v1554 = vld [vmem:[%s11 + $0x40] sm:$0xf]
  %v1555 = vld [vmem:[%s11 + $0x48] sm:$0xf]
  %v1556 = vld [vmem:[%s11 + $0x50] sm:$0xf]
  %v1557 = vld [vmem:[%s11 + $0x58] sm:$0xf]
  %v1558 = vld [vmem:[#allocation2] sm:$0xff]
  %v1559 = vld [vmem:[#allocation2 + $0x8] sm:$0xf]
  %v1560 = vmul.f32 %v1558, 0.001953125
  %v1561 = vmul.f32 %v1559, 0.001953125
  %v1562 = vld [vmem:[#allocation3] sm:$0xff]
  %v1563 = vld [vmem:[#allocation3 + $0x8] sm:$0xf]
  %v1564 = vmul.f32 %v1562, 0.001953125
  %v1565 = vmul.f32 %v1563, 0.001953125
  %v1566 = vmul.f32 %v1560, %v1560
  %v1567 = vmul.f32 %v1561, %v1561
  %v1568 = vsub.f32 %v1564, %v1566
  %v1569 = vsub.f32 %v1565, %v1567
  %v1570 = vld [vmem:[%s9] sm:$0xff]
  %v1571 = vld [vmem:[%s9 + $0x8] sm:$0xf]
  %v1572 = vadd.f32 %v1568, 1e-05
  %v1573 = vadd.f32 %v1569, 1e-05
  %v1574 = vrsqrt.pop %v1572
  %v1575 = vrsqrt.pop %v1573
  %v1576 = vmul.f32 %v1570, %v1574
  %v1577 = vmul.f32 %v1571, %v1575
  %v1578 = vld [vmem:[%s10] sm:$0xff]
  %v1579 = vld [vmem:[%s10 + $0x8] sm:$0xf]
  %v1580 = vmul.f32 %v1560, %v1576
  %v1581 = vmul.f32 %v1561, %v1577
  %v1582 = vsub.f32 %v1578, %v1580
  %v1583 = vsub.f32 %v1579, %v1581
  %1585 = vset.pattern.permute.xlu0 0
  %1586 = vperm.xlu0 %1585, %v1576
  %v1587 = vpop.permute.xlu0 %1586
  %1590 = vset.pattern.permute.xlu0 0
  %1591 = vperm.xlu0 %1590, %v1577
  %v1592 = vpop.permute.xlu0 %1591
  %v1594 = vmul.f32 %v1546, %v1587
  %v1595 = vmul.f32 %v1547, %v1587
  %v1596 = vmul.f32 %v1548, %v1587
  %v1597 = vmul.f32 %v1549, %v1587
  %v1598 = vmul.f32 %v1550, %v1587
  %v1599 = vmul.f32 %v1551, %v1587
  %v1600 = vmul.f32 %v1552, %v1592
  %v1601 = vmul.f32 %v1553, %v1592
  %v1602 = vmul.f32 %v1554, %v1592
  %v1603 = vmul.f32 %v1555, %v1592
  %v1604 = vmul.f32 %v1556, %v1592
  %v1605 = vmul.f32 %v1557, %v1592
  %1607 = vset.pattern.permute.xlu0 0
  %1608 = vperm.xlu0 %1607, %v1582
  %v1609 = vpop.permute.xlu0 %1608
  %1612 = vset.pattern.permute.xlu0 0
  %1613 = vperm.xlu0 %1612, %v1583
  %v1614 = vpop.permute.xlu0 %1613
  %v1616 = vadd.f32 %v1594, %v1609
  %v1617 = vadd.f32 %v1595, %v1609
  %v1618 = vadd.f32 %v1596, %v1609
  %v1619 = vadd.f32 %v1597, %v1609
  %v1620 = vadd.f32 %v1598, %v1609
  %v1621 = vadd.f32 %v1599, %v1609
  %v1622 = vadd.f32 %v1600, %v1614
  %v1623 = vadd.f32 %v1601, %v1614
  %v1624 = vadd.f32 %v1602, %v1614
  %v1625 = vadd.f32 %v1603, %v1614
  %v1626 = vadd.f32 %v1604, %v1614
  %v1627 = vadd.f32 %v1605, %v1614
  %v1628 = vmax.f32 %v1616, 0.0
  %v1629 = vmax.f32 %v1617, 0.0
  %v1630 = vmax.f32 %v1618, 0.0
  %v1631 = vmax.f32 %v1619, 0.0
  %v1632 = vmax.f32 %v1620, 0.0
  %v1633 = vmax.f32 %v1621, 0.0
  %v1634 = vmax.f32 %v1622, 0.0
  %v1635 = vmax.f32 %v1623, 0.0
  %v1636 = vmax.f32 %v1624, 0.0
  %v1637 = vmax.f32 %v1625, 0.0
  %v1638 = vmax.f32 %v1626, 0.0
  %v1639 = vmax.f32 %v1627, 0.0
  %v1640 = vmul.f32 %v1628, %v150
  %v1641 = vmul.f32 %v1629, %v154
  %v1642 = vmul.f32 %v1630, %v158
  %v1643 = vmul.f32 %v1631, %v162
  %v1644 = vmul.f32 %v1632, %v166
  %v1645 = vmul.f32 %v1633, %v170
  %v1646 = vmul.f32 %v1634, %v150
  %v1647 = vmul.f32 %v1635, %v154
  %v1648 = vmul.f32 %v1636, %v158
  %v1649 = vmul.f32 %v1637, %v162
  %v1650 = vmul.f32 %v1638, %v166
  %v1651 = vmul.f32 %v1639, %v170
  %v1652 = vld [vmem:[%s8] sm:$0xff]
  %v1653 = vld [vmem:[%s8 + $0x8] sm:$0xff]
  %v1654 = vld [vmem:[%s8 + $0x10] sm:$0xff]
  %v1655 = vld [vmem:[%s8 + $0x18] sm:$0xff]
  %v1656 = vld [vmem:[%s8 + $0x20] sm:$0xff]
  %v1657 = vld [vmem:[%s8 + $0x28] sm:$0xff]
  %v1658 = vld [vmem:[%s8 + $0x30] sm:$0xff]
  %v1659 = vld [vmem:[%s8 + $0x38] sm:$0xff]
  %v1660 = vld [vmem:[%s8 + $0x40] sm:$0xff]
  %vm1661 = vcmask 97280
  %v1663 = vsel %vm1661, %v1652, 0
  %v1666 = vsel %vm1661, %v1653, 0
  %v1669 = vsel %vm1661, %v1654, 0
  %v1672 = vsel %vm1661, %v1655, 0
  %v1675 = vsel %vm1661, %v1656, 0
  %v1678 = vsel %vm1661, %v1657, 0
  %v1681 = vsel %vm1661, %v1658, 0
  %v1684 = vsel %vm1661, %v1659, 0
  %v1687 = vsel %vm1661, %v1660, 0
  %v1690 = vsel %vm57, %v1646, 0
  %v1693 = vsel %vm57, %v1647, 0
  %v1696 = vsel %vm57, %v1648, 0
  %v1699 = vsel %vm57, %v1649, 0
  %v1702 = vsel %vm57, %v1650, 0
  %v1705 = vsel %vm57, %v1651, 0
  %1707 = vmatprep.subr.mxu0 0.0
  %1708 = vmatpush1.msra.mxu0 0.0
  %1709 = vmatprep.subr.mxu0 0.0
  %1710 = vmatpush1.msra.mxu0 0.0
  %1711 = vmatprep.subr.mxu0 0.0
  %1712 = vmatpush1.msra.mxu0 0.0
  %1713 = vmatprep.subr.mxu0 0.0
  %1714 = vmatpush1.msra.mxu0 0.0
  %1715 = vmatprep.subr.mxu0 0.0
  %1716 = vmatpush1.msra.mxu0 0.0
  %1717 = vmatprep.subr.mxu0 0.0
  %1718 = vmatpush1.msra.mxu0 0.0
  %1719 = vmatprep.subr.mxu0 0.0
  %1720 = vmatpush1.msra.mxu0 0.0
  %1721 = vmatprep.subr.mxu0 0.0
  %1722 = vmatpush1.msra.mxu0 0.0
  %1723 = vmatprep.subr.mxu0 0.0
  %1724 = vmatpush1.msra.mxu0 0.0
  %1725 = vmatprep.subr.mxu0 0.0
  %1726 = vmatpush1.msra.mxu0 0.0
  %1727 = vmatprep.subr.mxu0 0.0
  %1728 = vmatpush1.msra.mxu0 0.0
  %1729 = vmatprep.subr.mxu0 0.0
  %1730 = vmatpush1.msra.mxu0 0.0
  %1731 = vmatprep.subr.mxu0 0.0
  %1732 = vmatpush1.msra.mxu0 0.0
  %1733 = vmatprep.subr.mxu0 0.0
  %1734 = vmatpush1.msra.mxu0 0.0
  %1735 = vmatprep.subr.mxu0 %v1693
  %1736 = vmatpush1.msra.mxu0 %v1690
  %1737 = vmatprep.subr.mxu0 %v1641
  %1738 = vmatpush1.msra.mxu0 %v1640
  %1739 = vmatprep.subr.mxu0 0.0
  %1740 = vmatpush2.msra.mxu0 0.0
  %1741 = vmatprep.subr.mxu0 0.0
  %1742 = vmatpush2.msra.mxu0 0.0
  %1743 = vmatprep.subr.mxu0 0.0
  %1744 = vmatpush2.msra.mxu0 0.0
  %1745 = vmatprep.subr.mxu0 0.0
  %1746 = vmatpush2.msra.mxu0 0.0
  %1747 = vmatprep.subr.mxu0 0.0
  %1748 = vmatpush2.msra.mxu0 0.0
  %1749 = vmatprep.subr.mxu0 0.0
  %1750 = vmatpush2.msra.mxu0 0.0
  %1751 = vmatprep.subr.mxu0 0.0
  %1752 = vmatpush2.msra.mxu0 0.0
  %1753 = vmatprep.subr.mxu0 0.0
  %1754 = vmatpush2.msra.mxu0 0.0
  %1755 = vmatprep.subr.mxu0 0.0
  %1756 = vmatpush2.msra.mxu0 0.0
  %1757 = vmatprep.subr.mxu0 0.0
  %1758 = vmatpush2.msra.mxu0 0.0
  %1759 = vmatprep.subr.mxu0 0.0
  %1760 = vmatpush2.msra.mxu0 0.0
  %1761 = vmatprep.subr.mxu0 0.0
  %1762 = vmatpush2.msra.mxu0 0.0
  %1763 = vmatprep.subr.mxu0 0.0
  %1764 = vmatpush2.msra.mxu0 0.0
  %1765 = vmatprep.subr.mxu0 0.0
  %1766 = vmatpush2.msra.mxu0 0.0
  %1767 = vmatprep.subr.mxu0 0.0
  %1768 = vmatpush2.msra.mxu0 0.0
  %1769 = vmatprep.subr.mxu0 0.0
  %1770 = vmatpush2.msra.mxu0 0.0
  %1771 = vmatprep.mubr.f32.mxu0 0.0
  %1772 = vmatmul.mubr.f32.gmra.mxu0 %v1663
  %v1773 = vpop.f32.mrf.mxu0
  %v1774 = vadd.f32 0.0, %v1773
  %v1775 = vpop.f32.mrf.mxu0
  %v1776 = vadd.f32 0.0, %v1775
  %1777 = vmatprep.mubr.f32.mxu0 0.0
  %1778 = vmatmul.mubr.f32.gmra.mxu0 %v1666
  %v1779 = vpop.f32.mrf.mxu0
  %v1780 = vadd.f32 0.0, %v1779
  %v1781 = vpop.f32.mrf.mxu0
  %v1782 = vadd.f32 0.0, %v1781
  %1783 = vmatprep.mubr.f32.mxu0 0.0
  %1784 = vmatmul.mubr.f32.gmra.mxu0 %v1669
  %v1785 = vpop.f32.mrf.mxu0
  %v1786 = vadd.f32 0.0, %v1785
  %v1787 = vpop.f32.mrf.mxu0
  %v1788 = vadd.f32 0.0, %v1787
  %1789 = vmatprep.mubr.f32.mxu0 0.0
  %1790 = vmatmul.mubr.f32.gmra.mxu0 %v1672
  %v1791 = vpop.f32.mrf.mxu0
  %v1792 = vadd.f32 0.0, %v1791
  %v1793 = vpop.f32.mrf.mxu0
  %v1794 = vadd.f32 0.0, %v1793
  %1795 = vmatprep.mubr.f32.mxu0 0.0
  %1796 = vmatmul.mubr.f32.gmra.mxu0 %v1675
  %v1797 = vpop.f32.mrf.mxu0
  %v1798 = vadd.f32 0.0, %v1797
  %v1799 = vpop.f32.mrf.mxu0
  %v1800 = vadd.f32 0.0, %v1799
  %1801 = vmatprep.mubr.f32.mxu0 0.0
  %1802 = vmatmul.mubr.f32.gmra.mxu0 %v1678
  %v1803 = vpop.f32.mrf.mxu0
  %v1804 = vadd.f32 0.0, %v1803
  %v1805 = vpop.f32.mrf.mxu0
  %v1806 = vadd.f32 0.0, %v1805
  %1807 = vmatprep.mubr.f32.mxu0 0.0
  %1808 = vmatmul.mubr.f32.gmra.mxu0 %v1681
  %v1809 = vpop.f32.mrf.mxu0
  %v1810 = vadd.f32 0.0, %v1809
  %v1811 = vpop.f32.mrf.mxu0
  %v1812 = vadd.f32 0.0, %v1811
  %1813 = vmatprep.mubr.f32.mxu0 0.0
  %1814 = vmatmul.mubr.f32.gmra.mxu0 %v1684
  %v1815 = vpop.f32.mrf.mxu0
  %v1816 = vadd.f32 0.0, %v1815
  %v1817 = vpop.f32.mrf.mxu0
  %v1818 = vadd.f32 0.0, %v1817
  %1819 = vmatprep.mubr.f32.mxu0 0.0
  %1820 = vmatmul.mubr.f32.gmra.mxu0 %v1687
  %v1821 = vpop.f32.mrf.mxu0
  %v1822 = vadd.f32 0.0, %v1821
  %v1823 = vpop.f32.mrf.mxu0
  %v1824 = vadd.f32 0.0, %v1823
  %1825 = vdwg.mxu0
  %1826 = vmatprep.subr.mxu0 0.0
  %1827 = vmatpush1.msra.mxu0 0.0
  %1828 = vmatprep.subr.mxu0 0.0
  %1829 = vmatpush1.msra.mxu0 0.0
  %1830 = vmatprep.subr.mxu0 0.0
  %1831 = vmatpush1.msra.mxu0 0.0
  %1832 = vmatprep.subr.mxu0 0.0
  %1833 = vmatpush1.msra.mxu0 0.0
  %1834 = vmatprep.subr.mxu0 0.0
  %1835 = vmatpush1.msra.mxu0 0.0
  %1836 = vmatprep.subr.mxu0 0.0
  %1837 = vmatpush1.msra.mxu0 0.0
  %1838 = vmatprep.subr.mxu0 0.0
  %1839 = vmatpush1.msra.mxu0 0.0
  %1840 = vmatprep.subr.mxu0 0.0
  %1841 = vmatpush1.msra.mxu0 0.0
  %1842 = vmatprep.subr.mxu0 0.0
  %1843 = vmatpush1.msra.mxu0 0.0
  %1844 = vmatprep.subr.mxu0 0.0
  %1845 = vmatpush1.msra.mxu0 0.0
  %1846 = vmatprep.subr.mxu0 0.0
  %1847 = vmatpush1.msra.mxu0 0.0
  %1848 = vmatprep.subr.mxu0 0.0
  %1849 = vmatpush1.msra.mxu0 0.0
  %1850 = vmatprep.subr.mxu0 0.0
  %1851 = vmatpush1.msra.mxu0 0.0
  %1852 = vmatprep.subr.mxu0 0.0
  %1853 = vmatpush1.msra.mxu0 0.0
  %1854 = vmatprep.subr.mxu0 %v1699
  %1855 = vmatpush1.msra.mxu0 %v1696
  %1856 = vmatprep.subr.mxu0 %v1643
  %1857 = vmatpush1.msra.mxu0 %v1642
  %1858 = vmatprep.subr.mxu0 0.0
  %1859 = vmatpush2.msra.mxu0 0.0
  %1860 = vmatprep.subr.mxu0 0.0
  %1861 = vmatpush2.msra.mxu0 0.0
  %1862 = vmatprep.subr.mxu0 0.0
  %1863 = vmatpush2.msra.mxu0 0.0
  %1864 = vmatprep.subr.mxu0 0.0
  %1865 = vmatpush2.msra.mxu0 0.0
  %1866 = vmatprep.subr.mxu0 0.0
  %1867 = vmatpush2.msra.mxu0 0.0
  %1868 = vmatprep.subr.mxu0 0.0
  %1869 = vmatpush2.msra.mxu0 0.0
  %1870 = vmatprep.subr.mxu0 0.0
  %1871 = vmatpush2.msra.mxu0 0.0
  %1872 = vmatprep.subr.mxu0 0.0
  %1873 = vmatpush2.msra.mxu0 0.0
  %1874 = vmatprep.subr.mxu0 0.0
  %1875 = vmatpush2.msra.mxu0 0.0
  %1876 = vmatprep.subr.mxu0 0.0
  %1877 = vmatpush2.msra.mxu0 0.0
  %1878 = vmatprep.subr.mxu0 0.0
  %1879 = vmatpush2.msra.mxu0 0.0
  %1880 = vmatprep.subr.mxu0 0.0
  %1881 = vmatpush2.msra.mxu0 0.0
  %1882 = vmatprep.subr.mxu0 0.0
  %1883 = vmatpush2.msra.mxu0 0.0
  %1884 = vmatprep.subr.mxu0 0.0
  %1885 = vmatpush2.msra.mxu0 0.0
  %1886 = vmatprep.subr.mxu0 0.0
  %1887 = vmatpush2.msra.mxu0 0.0
  %1888 = vmatprep.subr.mxu0 0.0
  %1889 = vmatpush2.msra.mxu0 0.0
  %1890 = vmatprep.mubr.f32.mxu0 0.0
  %1891 = vmatmul.mubr.f32.gmra.mxu0 %v1663
  %v1892 = vpop.f32.mrf.mxu0
  %v1893 = vadd.f32 0.0, %v1892
  %v1894 = vpop.f32.mrf.mxu0
  %v1895 = vadd.f32 0.0, %v1894
  %1896 = vmatprep.mubr.f32.mxu0 0.0
  %1897 = vmatmul.mubr.f32.gmra.mxu0 %v1666
  %v1898 = vpop.f32.mrf.mxu0
  %v1899 = vadd.f32 0.0, %v1898
  %v1900 = vpop.f32.mrf.mxu0
  %v1901 = vadd.f32 0.0, %v1900
  %1902 = vmatprep.mubr.f32.mxu0 0.0
  %1903 = vmatmul.mubr.f32.gmra.mxu0 %v1669
  %v1904 = vpop.f32.mrf.mxu0
  %v1905 = vadd.f32 0.0, %v1904
  %v1906 = vpop.f32.mrf.mxu0
  %v1907 = vadd.f32 0.0, %v1906
  %1908 = vmatprep.mubr.f32.mxu0 0.0
  %1909 = vmatmul.mubr.f32.gmra.mxu0 %v1672
  %v1910 = vpop.f32.mrf.mxu0
  %v1911 = vadd.f32 0.0, %v1910
  %v1912 = vpop.f32.mrf.mxu0
  %v1913 = vadd.f32 0.0, %v1912
  %1914 = vmatprep.mubr.f32.mxu0 0.0
  %1915 = vmatmul.mubr.f32.gmra.mxu0 %v1675
  %v1916 = vpop.f32.mrf.mxu0
  %v1917 = vadd.f32 0.0, %v1916
  %v1918 = vpop.f32.mrf.mxu0
  %v1919 = vadd.f32 0.0, %v1918
  %1920 = vmatprep.mubr.f32.mxu0 0.0
  %1921 = vmatmul.mubr.f32.gmra.mxu0 %v1678
  %v1922 = vpop.f32.mrf.mxu0
  %v1923 = vadd.f32 0.0, %v1922
  %v1924 = vpop.f32.mrf.mxu0
  %v1925 = vadd.f32 0.0, %v1924
  %1926 = vmatprep.mubr.f32.mxu0 0.0
  %1927 = vmatmul.mubr.f32.gmra.mxu0 %v1681
  %v1928 = vpop.f32.mrf.mxu0
  %v1929 = vadd.f32 0.0, %v1928
  %v1930 = vpop.f32.mrf.mxu0
  %v1931 = vadd.f32 0.0, %v1930
  %1932 = vmatprep.mubr.f32.mxu0 0.0
  %1933 = vmatmul.mubr.f32.gmra.mxu0 %v1684
  %v1934 = vpop.f32.mrf.mxu0
  %v1935 = vadd.f32 0.0, %v1934
  %v1936 = vpop.f32.mrf.mxu0
  %v1937 = vadd.f32 0.0, %v1936
  %1938 = vmatprep.mubr.f32.mxu0 0.0
  %1939 = vmatmul.mubr.f32.gmra.mxu0 %v1687
  %v1940 = vpop.f32.mrf.mxu0
  %v1941 = vadd.f32 0.0, %v1940
  %v1942 = vpop.f32.mrf.mxu0
  %v1943 = vadd.f32 0.0, %v1942
  %1944 = vdwg.mxu0
  %1945 = vmatprep.subr.mxu0 0.0
  %1946 = vmatpush1.msra.mxu0 0.0
  %1947 = vmatprep.subr.mxu0 0.0
  %1948 = vmatpush1.msra.mxu0 0.0
  %1949 = vmatprep.subr.mxu0 0.0
  %1950 = vmatpush1.msra.mxu0 0.0
  %1951 = vmatprep.subr.mxu0 0.0
  %1952 = vmatpush1.msra.mxu0 0.0
  %1953 = vmatprep.subr.mxu0 0.0
  %1954 = vmatpush1.msra.mxu0 0.0
  %1955 = vmatprep.subr.mxu0 0.0
  %1956 = vmatpush1.msra.mxu0 0.0
  %1957 = vmatprep.subr.mxu0 0.0
  %1958 = vmatpush1.msra.mxu0 0.0
  %1959 = vmatprep.subr.mxu0 0.0
  %1960 = vmatpush1.msra.mxu0 0.0
  %1961 = vmatprep.subr.mxu0 0.0
  %1962 = vmatpush1.msra.mxu0 0.0
  %1963 = vmatprep.subr.mxu0 0.0
  %1964 = vmatpush1.msra.mxu0 0.0
  %1965 = vmatprep.subr.mxu0 0.0
  %1966 = vmatpush1.msra.mxu0 0.0
  %1967 = vmatprep.subr.mxu0 0.0
  %1968 = vmatpush1.msra.mxu0 0.0
  %1969 = vmatprep.subr.mxu0 0.0
  %1970 = vmatpush1.msra.mxu0 0.0
  %1971 = vmatprep.subr.mxu0 0.0
  %1972 = vmatpush1.msra.mxu0 0.0
  %1973 = vmatprep.subr.mxu0 %v1705
  %1974 = vmatpush1.msra.mxu0 %v1702
  %1975 = vmatprep.subr.mxu0 %v1645
  %1976 = vmatpush1.msra.mxu0 %v1644
  %1977 = vmatprep.subr.mxu0 0.0
  %1978 = vmatpush2.msra.mxu0 0.0
  %1979 = vmatprep.subr.mxu0 0.0
  %1980 = vmatpush2.msra.mxu0 0.0
  %1981 = vmatprep.subr.mxu0 0.0
  %1982 = vmatpush2.msra.mxu0 0.0
  %1983 = vmatprep.subr.mxu0 0.0
  %1984 = vmatpush2.msra.mxu0 0.0
  %1985 = vmatprep.subr.mxu0 0.0
  %1986 = vmatpush2.msra.mxu0 0.0
  %1987 = vmatprep.subr.mxu0 0.0
  %1988 = vmatpush2.msra.mxu0 0.0
  %1989 = vmatprep.subr.mxu0 0.0
  %1990 = vmatpush2.msra.mxu0 0.0
  %1991 = vmatprep.subr.mxu0 0.0
  %1992 = vmatpush2.msra.mxu0 0.0
  %1993 = vmatprep.subr.mxu0 0.0
  %1994 = vmatpush2.msra.mxu0 0.0
  %1995 = vmatprep.subr.mxu0 0.0
  %1996 = vmatpush2.msra.mxu0 0.0
  %1997 = vmatprep.subr.mxu0 0.0
  %1998 = vmatpush2.msra.mxu0 0.0
  %1999 = vmatprep.subr.mxu0 0.0
  %2000 = vmatpush2.msra.mxu0 0.0
  %2001 = vmatprep.subr.mxu0 0.0
  %2002 = vmatpush2.msra.mxu0 0.0
  %2003 = vmatprep.subr.mxu0 0.0
  %2004 = vmatpush2.msra.mxu0 0.0
  %2005 = vmatprep.subr.mxu0 0.0
  %2006 = vmatpush2.msra.mxu0 0.0
  %2007 = vmatprep.subr.mxu0 0.0
  %2008 = vmatpush2.msra.mxu0 0.0
  %2009 = vmatprep.mubr.f32.mxu0 0.0
  %2010 = vmatmul.mubr.f32.gmra.mxu0 %v1663
  %v2011 = vpop.f32.mrf.mxu0
  %v2012 = vadd.f32 0.0, %v2011
  %v2013 = vpop.f32.mrf.mxu0
  %v2014 = vadd.f32 0.0, %v2013
  %2015 = vmatprep.mubr.f32.mxu0 0.0
  %2016 = vmatmul.mubr.f32.gmra.mxu0 %v1666
  %v2017 = vpop.f32.mrf.mxu0
  %v2018 = vadd.f32 0.0, %v2017
  %v2019 = vpop.f32.mrf.mxu0
  %v2020 = vadd.f32 0.0, %v2019
  %2021 = vmatprep.mubr.f32.mxu0 0.0
  %2022 = vmatmul.mubr.f32.gmra.mxu0 %v1669
  %v2023 = vpop.f32.mrf.mxu0
  %v2024 = vadd.f32 0.0, %v2023
  %v2025 = vpop.f32.mrf.mxu0
  %v2026 = vadd.f32 0.0, %v2025
  %2027 = vmatprep.mubr.f32.mxu0 0.0
  %2028 = vmatmul.mubr.f32.gmra.mxu0 %v1672
  %v2029 = vpop.f32.mrf.mxu0
  %v2030 = vadd.f32 0.0, %v2029
  %v2031 = vpop.f32.mrf.mxu0
  %v2032 = vadd.f32 0.0, %v2031
  %2033 = vmatprep.mubr.f32.mxu0 0.0
  %2034 = vmatmul.mubr.f32.gmra.mxu0 %v1675
  %v2035 = vpop.f32.mrf.mxu0
  %v2036 = vadd.f32 0.0, %v2035
  %v2037 = vpop.f32.mrf.mxu0
  %v2038 = vadd.f32 0.0, %v2037
  %2039 = vmatprep.mubr.f32.mxu0 0.0
  %2040 = vmatmul.mubr.f32.gmra.mxu0 %v1678
  %v2041 = vpop.f32.mrf.mxu0
  %v2042 = vadd.f32 0.0, %v2041
  %v2043 = vpop.f32.mrf.mxu0
  %v2044 = vadd.f32 0.0, %v2043
  %2045 = vmatprep.mubr.f32.mxu0 0.0
  %2046 = vmatmul.mubr.f32.gmra.mxu0 %v1681
  %v2047 = vpop.f32.mrf.mxu0
  %v2048 = vadd.f32 0.0, %v2047
  %v2049 = vpop.f32.mrf.mxu0
  %v2050 = vadd.f32 0.0, %v2049
  %2051 = vmatprep.mubr.f32.mxu0 0.0
  %2052 = vmatmul.mubr.f32.gmra.mxu0 %v1684
  %v2053 = vpop.f32.mrf.mxu0
  %v2054 = vadd.f32 0.0, %v2053
  %v2055 = vpop.f32.mrf.mxu0
  %v2056 = vadd.f32 0.0, %v2055
  %2057 = vmatprep.mubr.f32.mxu0 0.0
  %2058 = vmatmul.mubr.f32.gmra.mxu0 %v1687
  %v2059 = vpop.f32.mrf.mxu0
  %v2060 = vadd.f32 0.0, %v2059
  %v2061 = vpop.f32.mrf.mxu0
  %v2062 = vadd.f32 0.0, %v2061
  %2063 = vdwg.mxu0
  %2064 = vrot.lane.b32.xlu0 %v1774, 19
  %v2065 = vpop.permute.xlu0 %2064
  %2066 = vrot.lane.b32.xlu0 %v1776, 19
  %v2067 = vpop.permute.xlu0 %2066
  %2068 = vrot.lane.b32.xlu0 %v1893, 19
  %v2069 = vpop.permute.xlu0 %2068
  %2070 = vrot.lane.b32.xlu0 %v1895, 19
  %v2071 = vpop.permute.xlu0 %2070
  %2072 = vrot.lane.b32.xlu0 %v2012, 19
  %v2073 = vpop.permute.xlu0 %2072
  %2074 = vrot.lane.b32.xlu0 %v2014, 19
  %v2075 = vpop.permute.xlu0 %2074
  %v2076 = vsel %vm609, %v2073, %v2075
  %v2077 = vsel %vm609, %v2071, %v2073
  %v2078 = vsel %vm609, %v2069, %v2071
  %v2079 = vsel %vm609, %v2067, %v2069
  %v2080 = vsel %vm609, %v2065, %v2067
  %v2081 = vsel %vm609, %v2075, %v2065
  %2082 = vrot.lane.b32.xlu0 %v1780, 18
  %v2083 = vpop.permute.xlu0 %2082
  %2084 = vrot.lane.b32.xlu0 %v1782, 18
  %v2085 = vpop.permute.xlu0 %2084
  %2086 = vrot.lane.b32.xlu0 %v1899, 18
  %v2087 = vpop.permute.xlu0 %2086
  %2088 = vrot.lane.b32.xlu0 %v1901, 18
  %v2089 = vpop.permute.xlu0 %2088
  %2090 = vrot.lane.b32.xlu0 %v2018, 18
  %v2091 = vpop.permute.xlu0 %2090
  %2092 = vrot.lane.b32.xlu0 %v2020, 18
  %v2093 = vpop.permute.xlu0 %2092
  %v2094 = vsel %vm628, %v2091, %v2093
  %v2095 = vsel %vm628, %v2089, %v2091
  %v2096 = vsel %vm628, %v2087, %v2089
  %v2097 = vsel %vm628, %v2085, %v2087
  %v2098 = vsel %vm628, %v2083, %v2085
  %v2099 = vsel %vm628, %v2093, %v2083
  %v2100 = vadd.f32 %v2081, %v2099
  %v2101 = vadd.f32 %v2080, %v2098
  %v2102 = vadd.f32 %v2079, %v2097
  %v2103 = vadd.f32 %v2078, %v2096
  %v2104 = vadd.f32 %v2077, %v2095
  %v2105 = vadd.f32 %v2076, %v2094
  %2106 = vrot.lane.b32.xlu0 %v1786, 17
  %v2107 = vpop.permute.xlu0 %2106
  %2108 = vrot.lane.b32.xlu0 %v1788, 17
  %v2109 = vpop.permute.xlu0 %2108
  %2110 = vrot.lane.b32.xlu0 %v1905, 17
  %v2111 = vpop.permute.xlu0 %2110
  %2112 = vrot.lane.b32.xlu0 %v1907, 17
  %v2113 = vpop.permute.xlu0 %2112
  %2114 = vrot.lane.b32.xlu0 %v2024, 17
  %v2115 = vpop.permute.xlu0 %2114
  %2116 = vrot.lane.b32.xlu0 %v2026, 17
  %v2117 = vpop.permute.xlu0 %2116
  %v2118 = vsel %vm653, %v2115, %v2117
  %v2119 = vsel %vm653, %v2113, %v2115
  %v2120 = vsel %vm653, %v2111, %v2113
  %v2121 = vsel %vm653, %v2109, %v2111
  %v2122 = vsel %vm653, %v2107, %v2109
  %v2123 = vsel %vm653, %v2117, %v2107
  %v2124 = vadd.f32 %v2100, %v2123
  %v2125 = vadd.f32 %v2101, %v2122
  %v2126 = vadd.f32 %v2102, %v2121
  %v2127 = vadd.f32 %v2103, %v2120
  %v2128 = vadd.f32 %v2104, %v2119
  %v2129 = vadd.f32 %v2105, %v2118
  %2130 = vrot.lane.b32.xlu0 %v1792, 1
  %v2131 = vpop.permute.xlu0 %2130
  %2132 = vrot.lane.b32.xlu0 %v1794, 1
  %v2133 = vpop.permute.xlu0 %2132
  %2134 = vrot.lane.b32.xlu0 %v1911, 1
  %v2135 = vpop.permute.xlu0 %2134
  %2136 = vrot.lane.b32.xlu0 %v1913, 1
  %v2137 = vpop.permute.xlu0 %2136
  %2138 = vrot.lane.b32.xlu0 %v2030, 1
  %v2139 = vpop.permute.xlu0 %2138
  %2140 = vrot.lane.b32.xlu0 %v2032, 1
  %v2141 = vpop.permute.xlu0 %2140
  %v2142 = vsel %vm678, %v2139, %v2141
  %v2143 = vsel %vm678, %v2137, %v2139
  %v2144 = vsel %vm678, %v2135, %v2137
  %v2145 = vsel %vm678, %v2133, %v2135
  %v2146 = vsel %vm678, %v2131, %v2133
  %v2147 = vsel %vm678, %v2141, %v2131
  %v2148 = vadd.f32 %v2124, %v2147
  %v2149 = vadd.f32 %v2125, %v2146
  %v2150 = vadd.f32 %v2126, %v2145
  %v2151 = vadd.f32 %v2127, %v2144
  %v2152 = vadd.f32 %v2128, %v2143
  %v2153 = vadd.f32 %v2129, %v2142
  %v2154 = vadd.f32 %v2148, %v1798
  %v2155 = vadd.f32 %v2149, %v1800
  %v2156 = vadd.f32 %v2150, %v1917
  %v2157 = vadd.f32 %v2151, %v1919
  %v2158 = vadd.f32 %v2152, %v2036
  %v2159 = vadd.f32 %v2153, %v2038
  %2160 = vrot.lane.b32.xlu0 %v1804, 127
  %v2161 = vpop.permute.xlu0 %2160
  %2162 = vrot.lane.b32.xlu0 %v1806, 127
  %v2163 = vpop.permute.xlu0 %2162
  %2164 = vrot.lane.b32.xlu0 %v1923, 127
  %v2165 = vpop.permute.xlu0 %2164
  %2166 = vrot.lane.b32.xlu0 %v1925, 127
  %v2167 = vpop.permute.xlu0 %2166
  %2168 = vrot.lane.b32.xlu0 %v2042, 127
  %v2169 = vpop.permute.xlu0 %2168
  %2170 = vrot.lane.b32.xlu0 %v2044, 127
  %v2171 = vpop.permute.xlu0 %2170
  %v2172 = vsel %vm709, %v2169, %v2171
  %v2173 = vsel %vm709, %v2167, %v2169
  %v2174 = vsel %vm709, %v2165, %v2167
  %v2175 = vsel %vm709, %v2163, %v2165
  %v2176 = vsel %vm709, %v2161, %v2163
  %v2177 = vsel %vm709, %v2171, %v2161
  %v2178 = vadd.f32 %v2154, %v2176
  %v2179 = vadd.f32 %v2155, %v2175
  %v2180 = vadd.f32 %v2156, %v2174
  %v2181 = vadd.f32 %v2157, %v2173
  %v2182 = vadd.f32 %v2158, %v2172
  %v2183 = vadd.f32 %v2159, %v2177
  %2184 = vrot.lane.b32.xlu0 %v1810, 111
  %v2185 = vpop.permute.xlu0 %2184
  %2186 = vrot.lane.b32.xlu0 %v1812, 111
  %v2187 = vpop.permute.xlu0 %2186
  %2188 = vrot.lane.b32.xlu0 %v1929, 111
  %v2189 = vpop.permute.xlu0 %2188
  %2190 = vrot.lane.b32.xlu0 %v1931, 111
  %v2191 = vpop.permute.xlu0 %2190
  %2192 = vrot.lane.b32.xlu0 %v2048, 111
  %v2193 = vpop.permute.xlu0 %2192
  %2194 = vrot.lane.b32.xlu0 %v2050, 111
  %v2195 = vpop.permute.xlu0 %2194
  %v2196 = vsel %vm734, %v2193, %v2195
  %v2197 = vsel %vm734, %v2191, %v2193
  %v2198 = vsel %vm734, %v2189, %v2191
  %v2199 = vsel %vm734, %v2187, %v2189
  %v2200 = vsel %vm734, %v2185, %v2187
  %v2201 = vsel %vm734, %v2195, %v2185
  %v2202 = vadd.f32 %v2178, %v2200
  %v2203 = vadd.f32 %v2179, %v2199
  %v2204 = vadd.f32 %v2180, %v2198
  %v2205 = vadd.f32 %v2181, %v2197
  %v2206 = vadd.f32 %v2182, %v2196
  %v2207 = vadd.f32 %v2183, %v2201
  %2208 = vrot.lane.b32.xlu0 %v1816, 110
  %v2209 = vpop.permute.xlu0 %2208
  %2210 = vrot.lane.b32.xlu0 %v1818, 110
  %v2211 = vpop.permute.xlu0 %2210
  %2212 = vrot.lane.b32.xlu0 %v1935, 110
  %v2213 = vpop.permute.xlu0 %2212
  %2214 = vrot.lane.b32.xlu0 %v1937, 110
  %v2215 = vpop.permute.xlu0 %2214
  %2216 = vrot.lane.b32.xlu0 %v2054, 110
  %v2217 = vpop.permute.xlu0 %2216
  %2218 = vrot.lane.b32.xlu0 %v2056, 110
  %v2219 = vpop.permute.xlu0 %2218
  %v2220 = vsel %vm759, %v2217, %v2219
  %v2221 = vsel %vm759, %v2215, %v2217
  %v2222 = vsel %vm759, %v2213, %v2215
  %v2223 = vsel %vm759, %v2211, %v2213
  %v2224 = vsel %vm759, %v2209, %v2211
  %v2225 = vsel %vm759, %v2219, %v2209
  %v2226 = vadd.f32 %v2202, %v2224
  %v2227 = vadd.f32 %v2203, %v2223
  %v2228 = vadd.f32 %v2204, %v2222
  %v2229 = vadd.f32 %v2205, %v2221
  %v2230 = vadd.f32 %v2206, %v2220
  %v2231 = vadd.f32 %v2207, %v2225
  %2232 = vrot.lane.b32.xlu0 %v1822, 109
  %v2233 = vpop.permute.xlu0 %2232
  %2234 = vrot.lane.b32.xlu0 %v1824, 109
  %v2235 = vpop.permute.xlu0 %2234
  %2236 = vrot.lane.b32.xlu0 %v1941, 109
  %v2237 = vpop.permute.xlu0 %2236
  %2238 = vrot.lane.b32.xlu0 %v1943, 109
  %v2239 = vpop.permute.xlu0 %2238
  %2240 = vrot.lane.b32.xlu0 %v2060, 109
  %v2241 = vpop.permute.xlu0 %2240
  %2242 = vrot.lane.b32.xlu0 %v2062, 109
  %v2243 = vpop.permute.xlu0 %2242
  %v2244 = vsel %vm784, %v2241, %v2243
  %v2245 = vsel %vm784, %v2239, %v2241
  %v2246 = vsel %vm784, %v2237, %v2239
  %v2247 = vsel %vm784, %v2235, %v2237
  %v2248 = vsel %vm784, %v2233, %v2235
  %v2249 = vsel %vm784, %v2243, %v2233
  %v2250 = vadd.f32 %v2226, %v2248
  %v2251 = vadd.f32 %v2227, %v2247
  %v2252 = vadd.f32 %v2228, %v2246
  %v2253 = vadd.f32 %v2229, %v2245
  %v2254 = vadd.f32 %v2230, %v2244
  %v2255 = vadd.f32 %v2231, %v2249
  %v2256 = vmul.f32 %v2250, %v150
  %v2257 = vmul.f32 %v2251, %v154
  %v2258 = vmul.f32 %v2252, %v158
  %v2259 = vmul.f32 %v2253, %v162
  %v2260 = vmul.f32 %v2254, %v166
  %v2261 = vmul.f32 %v2255, %v170
  %v2268 = vrot.slane %v2256, 4
  %v2269 = vrot.slane %v2257, 4
  %v2270 = vrot.slane %v2258, 4
  %v2271 = vrot.slane %v2259, 4
  %v2272 = vrot.slane %v2260, 4
  %v2273 = vrot.slane %v2261, 4
  %2280 = vst [vmem:[%s11 + $0x30] sm:$0xf0] %v2268
  %2281 = vst [vmem:[%s11 + $0x38] sm:$0xf0] %v2269
  %2282 = vst [vmem:[%s11 + $0x40] sm:$0xf0] %v2270
  %2283 = vst [vmem:[%s11 + $0x48] sm:$0xf0] %v2271
  %2284 = vst [vmem:[%s11 + $0x50] sm:$0xf0] %v2272
  %2285 = vst [vmem:[%s11 + $0x58] sm:$0xf0] %v2273
  // Predicated region
  $region46: #{dense_block_forward.1} parent=0 // pred_check
    _
  $region47: #{dense_block_forward.1} parent=0 // pred_check_branch
    %2287 = sbr.rel (0) target = $region49
  $region48: #{dense_block_forward.1} parent=0 // pred_region
    _
  $region49: #{dense_block_forward.1} parent=0 // pred_fallthru
    _
  // Predicated region
  $region50: #{dense_block_forward.1} parent=0 // pred_check
    _
  $region51: #{dense_block_forward.1} parent=0 // pred_check_branch
    %2289 = sbr.rel (0) target = $region53
  $region52: #{dense_block_forward.1} parent=0 // pred_region
    _
  $region53: #{dense_block_forward.1} parent=0 // pred_fallthru
    _

</llo_original>
